<compile_context>
chip_gen: v5e
topology: v5e:2x2
jax: 0.10.0
libtpu: 0.0.40
codegen_flags: <defaults>
</compile_context>

<pallas_src>
import math

import jax
import jax.numpy as jnp
from jax.experimental import pallas as pl
from jax.experimental.pallas import tpu as pltpu


def _round_up(x, m):
    return ((x + m - 1) // m) * m


def _vmem_budget_bytes():
    """Generation-aware usable VMEM budget (~3/4 of physical capacity).

    128 MiB (v5e/v6e) -> 96 MiB budget; 64 MiB (v7x) -> 48 MiB budget.
    Falls back to the conservative v7x number if the query is unavailable.
    """
    capacity = 64 * 1024 * 1024
    try:
        capacity = int(pltpu.get_tpu_info().vmem_capacity_bytes)
    except Exception:
        pass
    return (capacity * 3) // 4


def _make_fused_mlp_kernel(num_layers, mxu_dtype=None):
    """h = x; for each layer i: h = tanh(h @ W_i + b_i); store final h.

    mxu_dtype: optional narrower MXU-input dtype (e.g. jnp.bfloat16).  The MXU
    is bf16-native on v5e/v6e/v7x (f32 matmul is multi-pass, ~3x slower), but
    bf16 inputs break a 1e-4 tolerance, so this is opt-in.  Accumulation and
    the bias-add / tanh epilogue stay in f32 (v5e has no bf16 VPU/EUP);
    tanh dispatches to the EUP slot.
    """

    def kernel(*refs):
        # refs = (x_ref, w0, b0, w1, b1, ..., o_ref)
        x_ref = refs[0]
        o_ref = refs[-1]
        wb = refs[1:-1]

        h = x_ref[...]                                     # (tm, K) f32
        for i in range(num_layers):
            w = wb[2 * i][...]                             # (K_i, N_i)
            b = wb[2 * i + 1][...]                         # (1,  N_i)
            if mxu_dtype is not None:
                h = h.astype(mxu_dtype)
                w = w.astype(mxu_dtype)
            acc = jnp.dot(h, w, preferred_element_type=jnp.float32)
            h = jnp.tanh(acc + b)
        o_ref[...] = h.astype(o_ref.dtype)

    return kernel


def _fused_mlp_call(x, layers, *, tm, budget, mxu_dtype, single_buffer_weights):
    """One fused pallas_call over `layers` with weights resident in VMEM."""
    M, K = x.shape
    H = layers[-1][0].shape[1]
    num_layers = len(layers)
    max_dim = max([K] + [int(w.shape[1]) for w, _ in layers])
    bpe = 4  # f32

    # --- VMEM budget -------------------------------------------------------
    wbuf = 1 if single_buffer_weights else 2
    w_bytes = wbuf * sum(int(w.size) + int(b.size) for w, b in layers) * bpe
    # Per batch-row: double-buffered x tile + double-buffered out tile plus
    # one f32 activation/accumulator temporary per layer (these live in VMEM,
    # not vregs, once tm*dim exceeds the 64-vreg register file).
    per_row = (2 * K + 2 * H + num_layers * max_dim) * bpe
    headroom = budget - w_bytes
    if headroom < 8 * per_row:
        raise ValueError("resident weights do not fit in the VMEM budget")

    # --- batch row-tile ----------------------------------------------------
    tm_cap = headroom // per_row
    m8 = _round_up(M, 8)
    tm_eff = int(min(tm, tm_cap, m8))
    if m8 >= 16:
        # Keep >= 2 grid programs so the "parallel" batch axis can shard
        # across both TensorCores on v7x (harmless on 1-TC v5e/v6e).
        tm_eff = min(tm_eff, _round_up(pl.cdiv(m8, 2), 8))
    tm_eff = max(8, (tm_eff // 8) * 8)                     # f32 sublane multiple

    # Pad the batch dim once (not per layer); sliced off once at the end.
    M_pad = _round_up(M, tm_eff)
    x_p = jnp.pad(x, ((0, M_pad - M), (0, 0))) if M_pad != M else x

    # --- specs -------------------------------------------------------------
    resident_kwargs = (
        dict(pipeline_mode=pl.Buffered(1)) if single_buffer_weights else {}
    )

    inputs = [x_p]
    in_specs = [pl.BlockSpec((tm_eff, K), lambda i: (i, 0))]        # x row-tile
    for w, b in layers:
        kin, kout = w.shape
        inputs.append(w)
        in_specs.append(
            pl.BlockSpec((kin, kout), lambda i: (0, 0), **resident_kwargs))
        inputs.append(b.reshape(1, kout))
        in_specs.append(
            pl.BlockSpec((1, kout), lambda i: (0, 0), **resident_kwargs))

    flops = 2 * M_pad * sum(int(w.shape[0]) * int(w.shape[1]) for w, _ in layers)
    transcendentals = M_pad * sum(int(w.shape[1]) for w, _ in layers)
    bytes_accessed = bpe * (
        M_pad * K
        + sum(int(w.size) + int(b.size) for w, b in layers)
        + M_pad * H)

    out = pl.pallas_call(
        _make_fused_mlp_kernel(num_layers, mxu_dtype),
        out_shape=jax.ShapeDtypeStruct((M_pad, H), jnp.float32),
        grid_spec=pltpu.PrefetchScalarGridSpec(
            num_scalar_prefetch=0,
            grid=(M_pad // tm_eff,),
            in_specs=in_specs,
            out_specs=pl.BlockSpec((tm_eff, H), lambda i: (i, 0)),
        ),
        compiler_params=pltpu.CompilerParams(
            dimension_semantics=("parallel",),   # batch axis shards across v7x TCs
            vmem_limit_bytes=int(budget),
        ),
        cost_estimate=pl.CostEstimate(
            flops=int(flops),
            transcendentals=int(transcendentals),
            bytes_accessed=int(bytes_accessed),
        ),
    )(*inputs)

    return out[:M] if M_pad != M else out


def fc_forward(x, params, *, tm=512, mxu_dtype=None):
    """Forward pass of FC: sequential [Linear -> Tanh] * num_blocks, fused.

    x: (M, data_dim) float32
    params: list of (w, b) with w: (in, out), b: (out,)
    mxu_dtype: optional bf16 MXU-input cast (valuable on v5e/v6e/v7x alike);
        default None keeps the f32 path that holds a 1e-4 tolerance.
    """
    budget = _vmem_budget_bytes()

    def run(layers, xin):
        # Prefer single-buffered resident weights (constant index_map blocks
        # never need double buffering); fall back to default pipelining if
        # this jax build rejects pl.Buffered(1).
        try:
            return _fused_mlp_call(xin, layers, tm=tm, budget=budget,
                                   mxu_dtype=mxu_dtype,
                                   single_buffer_weights=True)
        except ValueError:
            raise
        except Exception:
            return _fused_mlp_call(xin, layers, tm=tm, budget=budget,
                                   mxu_dtype=mxu_dtype,
                                   single_buffer_weights=False)

    try:
        return run(params, x)
    except ValueError:
        # Full weight set cannot stay resident in VMEM: degrade gracefully to
        # one fused call per layer (each layer's weights resident on their own).
        # TODO(synk): K/N-tile individual layers (emit_pipeline over weight
        # tiles) if even a single layer's weights exceed the VMEM budget.
        h = x
        for layer in params:
            h = run([layer], h)
        return h


def init_fc_params(key, data_dim=3, hidden_dim=128, num_blocks=5):
    """Deterministic init matching nn.Linear's default (uniform +-1/sqrt(fan_in)).

    Weights are stored as (in_features, out_features) (transposed vs. PyTorch).
    """
    dims = [data_dim] + [hidden_dim] * num_blocks
    params = []
    for i in range(num_blocks):
        fan_in, fan_out = dims[i], dims[i + 1]
        key, kw, kb = jax.random.split(key, 3)
        bound = 1.0 / math.sqrt(fan_in)
        w = jax.random.uniform(kw, (fan_in, fan_out), jnp.float32, -bound, bound)
        b = jax.random.uniform(kb, (fan_out,), jnp.float32, -bound, bound)
        params.append((w, b))
    return params


if __name__ == "__main__":
    key = jax.random.PRNGKey(0)
    k_params, k_x = jax.random.split(key)

    # Small but lane-dense demo shapes (module default hidden_dim=512 also works;
    # TODO(synk): pad hidden_dim to a multiple of 256 at model-config time to
    # fully fill the 256-wide MXU on v6e/v7x).
    data_dim, hidden_dim, num_blocks = 3, 128, 5
    batch = 128

    params = init_fc_params(k_params, data_dim=data_dim,
                            hidden_dim=hidden_dim, num_blocks=num_blocks)
    x = jax.random.normal(k_x, (batch, data_dim), dtype=jnp.float32)

    out = jax.block_until_ready(fc_forward(x, params))

    # Sanity check against plain-JAX reference.
    ref = x
    for w, b in params:
        ref = jnp.tanh(jnp.dot(ref, w, preferred_element_type=jnp.float32) + b)
    assert out.shape == (batch, hidden_dim)
    assert jnp.allclose(out, ref, atol=1e-4, rtol=1e-4), float(
        jnp.max(jnp.abs(out - ref)))

    print("KERNEL_OK")
</pallas_src>

<mosaic_0001>
module attributes {stable_mosaic.version = 11 : i64} {
  func.func @kernel(%arg0: i32, %arg1: memref<64x3xf32, #tpu.memory_space<vmem>>, %arg2: memref<3x128xf32, #tpu.memory_space<vmem>>, %arg3: memref<1x128xf32, #tpu.memory_space<vmem>>, %arg4: memref<128x128xf32, #tpu.memory_space<vmem>>, %arg5: memref<1x128xf32, #tpu.memory_space<vmem>>, %arg6: memref<128x128xf32, #tpu.memory_space<vmem>>, %arg7: memref<1x128xf32, #tpu.memory_space<vmem>>, %arg8: memref<128x128xf32, #tpu.memory_space<vmem>>, %arg9: memref<1x128xf32, #tpu.memory_space<vmem>>, %arg10: memref<128x128xf32, #tpu.memory_space<vmem>>, %arg11: memref<1x128xf32, #tpu.memory_space<vmem>>, %arg12: memref<64x128xf32, #tpu.memory_space<vmem>>) attributes {dimension_semantics = [#tpu.dimension_semantics<parallel>], iteration_bounds = array<i64: 2>, scalar_prefetch = 0 : i64, scratch_operands = 0 : i64, tpu.core_type = #tpu.core_type<tc>, window_params = [{transform_indices = @transform_0, window_bounds = array<i64: 64, 3>}, {pipeline_mode = #tpu.pipeline_mode<synchronous>, transform_indices = @transform_1, window_bounds = array<i64: 3, 128>}, {pipeline_mode = #tpu.pipeline_mode<synchronous>, transform_indices = @transform_2, window_bounds = array<i64: 1, 128>}, {pipeline_mode = #tpu.pipeline_mode<synchronous>, transform_indices = @transform_3, window_bounds = array<i64: 128, 128>}, {pipeline_mode = #tpu.pipeline_mode<synchronous>, transform_indices = @transform_4, window_bounds = array<i64: 1, 128>}, {pipeline_mode = #tpu.pipeline_mode<synchronous>, transform_indices = @transform_5, window_bounds = array<i64: 128, 128>}, {pipeline_mode = #tpu.pipeline_mode<synchronous>, transform_indices = @transform_6, window_bounds = array<i64: 1, 128>}, {pipeline_mode = #tpu.pipeline_mode<synchronous>, transform_indices = @transform_7, window_bounds = array<i64: 128, 128>}, {pipeline_mode = #tpu.pipeline_mode<synchronous>, transform_indices = @transform_8, window_bounds = array<i64: 1, 128>}, {pipeline_mode = #tpu.pipeline_mode<synchronous>, transform_indices = @transform_9, window_bounds = array<i64: 128, 128>}, {pipeline_mode = #tpu.pipeline_mode<synchronous>, transform_indices = @transform_10, window_bounds = array<i64: 1, 128>}, {transform_indices = @transform_11, window_bounds = array<i64: 64, 128>}]} {
    %c0 = arith.constant 0 : index
    %c0_0 = arith.constant 0 : index
    %0 = vector.load %arg1[%c0, %c0_0] : memref<64x3xf32, #tpu.memory_space<vmem>>, vector<64x3xf32>
    %c0_1 = arith.constant 0 : index
    %c0_2 = arith.constant 0 : index
    %1 = vector.load %arg2[%c0_1, %c0_2] : memref<3x128xf32, #tpu.memory_space<vmem>>, vector<3x128xf32>
    %c0_3 = arith.constant 0 : index
    %c0_4 = arith.constant 0 : index
    %2 = vector.load %arg3[%c0_3, %c0_4] : memref<1x128xf32, #tpu.memory_space<vmem>>, vector<1x128xf32>
    %cst = arith.constant dense<0.000000e+00> : vector<64x128xf32>
    %3 = tpu.matmul %0, %1, %cst {dimension_numbers = #tpu.dot_dimension_numbers<[1], [0], [0], [1], [0, 0, 1, 1], [], []>} : vector<64x3xf32>, vector<3x128xf32>, vector<64x128xf32> -> vector<64x128xf32>
    %4 = vector.broadcast %2 : vector<1x128xf32> to vector<64x128xf32>
    %5 = arith.addf %3, %4 : vector<64x128xf32>
    %6 = math.tanh %5 : vector<64x128xf32>
    %c0_5 = arith.constant 0 : index
    %c0_6 = arith.constant 0 : index
    %7 = vector.load %arg4[%c0_5, %c0_6] : memref<128x128xf32, #tpu.memory_space<vmem>>, vector<128x128xf32>
    %c0_7 = arith.constant 0 : index
    %c0_8 = arith.constant 0 : index
    %8 = vector.load %arg5[%c0_7, %c0_8] : memref<1x128xf32, #tpu.memory_space<vmem>>, vector<1x128xf32>
    %cst_9 = arith.constant dense<0.000000e+00> : vector<64x128xf32>
    %9 = tpu.matmul %6, %7, %cst_9 {dimension_numbers = #tpu.dot_dimension_numbers<[1], [0], [0], [1], [0, 0, 1, 1], [], []>} : vector<64x128xf32>, vector<128x128xf32>, vector<64x128xf32> -> vector<64x128xf32>
    %10 = vector.broadcast %8 : vector<1x128xf32> to vector<64x128xf32>
    %11 = arith.addf %9, %10 : vector<64x128xf32>
    %12 = math.tanh %11 : vector<64x128xf32>
    %c0_10 = arith.constant 0 : index
    %c0_11 = arith.constant 0 : index
    %13 = vector.load %arg6[%c0_10, %c0_11] : memref<128x128xf32, #tpu.memory_space<vmem>>, vector<128x128xf32>
    %c0_12 = arith.constant 0 : index
    %c0_13 = arith.constant 0 : index
    %14 = vector.load %arg7[%c0_12, %c0_13] : memref<1x128xf32, #tpu.memory_space<vmem>>, vector<1x128xf32>
    %cst_14 = arith.constant dense<0.000000e+00> : vector<64x128xf32>
    %15 = tpu.matmul %12, %13, %cst_14 {dimension_numbers = #tpu.dot_dimension_numbers<[1], [0], [0], [1], [0, 0, 1, 1], [], []>} : vector<64x128xf32>, vector<128x128xf32>, vector<64x128xf32> -> vector<64x128xf32>
    %16 = vector.broadcast %14 : vector<1x128xf32> to vector<64x128xf32>
    %17 = arith.addf %15, %16 : vector<64x128xf32>
    %18 = math.tanh %17 : vector<64x128xf32>
    %c0_15 = arith.constant 0 : index
    %c0_16 = arith.constant 0 : index
    %19 = vector.load %arg8[%c0_15, %c0_16] : memref<128x128xf32, #tpu.memory_space<vmem>>, vector<128x128xf32>
    %c0_17 = arith.constant 0 : index
    %c0_18 = arith.constant 0 : index
    %20 = vector.load %arg9[%c0_17, %c0_18] : memref<1x128xf32, #tpu.memory_space<vmem>>, vector<1x128xf32>
    %cst_19 = arith.constant dense<0.000000e+00> : vector<64x128xf32>
    %21 = tpu.matmul %18, %19, %cst_19 {dimension_numbers = #tpu.dot_dimension_numbers<[1], [0], [0], [1], [0, 0, 1, 1], [], []>} : vector<64x128xf32>, vector<128x128xf32>, vector<64x128xf32> -> vector<64x128xf32>
    %22 = vector.broadcast %20 : vector<1x128xf32> to vector<64x128xf32>
    %23 = arith.addf %21, %22 : vector<64x128xf32>
    %24 = math.tanh %23 : vector<64x128xf32>
    %c0_20 = arith.constant 0 : index
    %c0_21 = arith.constant 0 : index
    %25 = vector.load %arg10[%c0_20, %c0_21] : memref<128x128xf32, #tpu.memory_space<vmem>>, vector<128x128xf32>
    %c0_22 = arith.constant 0 : index
    %c0_23 = arith.constant 0 : index
    %26 = vector.load %arg11[%c0_22, %c0_23] : memref<1x128xf32, #tpu.memory_space<vmem>>, vector<1x128xf32>
    %cst_24 = arith.constant dense<0.000000e+00> : vector<64x128xf32>
    %27 = tpu.matmul %24, %25, %cst_24 {dimension_numbers = #tpu.dot_dimension_numbers<[1], [0], [0], [1], [0, 0, 1, 1], [], []>} : vector<64x128xf32>, vector<128x128xf32>, vector<64x128xf32> -> vector<64x128xf32>
    %28 = vector.broadcast %26 : vector<1x128xf32> to vector<64x128xf32>
    %29 = arith.addf %27, %28 : vector<64x128xf32>
    %30 = math.tanh %29 : vector<64x128xf32>
    %c0_25 = arith.constant 0 : index
    %c0_26 = arith.constant 0 : index
    %31 = vector.load %arg12[%c0_25, %c0_26] : memref<64x128xf32, #tpu.memory_space<vmem>>, vector<64x128xf32>
    tpu.vector_store %arg12[%c0_25, %c0_26], %30 {strides = array<i32>} : memref<64x128xf32, #tpu.memory_space<vmem>>, vector<64x128xf32>,
    return
  }
  func.func @transform_0(%arg0: i32) -> (i32, i32) {
    %c0_i32 = arith.constant 0 : i32
    %c0_i32_0 = arith.constant 0 : i32
    return %arg0, %c0_i32 : i32, i32
  }
  func.func @transform_1(%arg0: i32) -> (i32, i32) {
    %c0_i32 = arith.constant 0 : i32
    %c0_i32_0 = arith.constant 0 : i32
    %c0_i32_1 = arith.constant 0 : i32
    return %c0_i32, %c0_i32_0 : i32, i32
  }
  func.func @transform_2(%arg0: i32) -> (i32, i32) {
    %c0_i32 = arith.constant 0 : i32
    %c0_i32_0 = arith.constant 0 : i32
    %c0_i32_1 = arith.constant 0 : i32
    return %c0_i32, %c0_i32_0 : i32, i32
  }
  func.func @transform_3(%arg0: i32) -> (i32, i32) {
    %c0_i32 = arith.constant 0 : i32
    %c0_i32_0 = arith.constant 0 : i32
    %c0_i32_1 = arith.constant 0 : i32
    return %c0_i32, %c0_i32_0 : i32, i32
  }
  func.func @transform_4(%arg0: i32) -> (i32, i32) {
    %c0_i32 = arith.constant 0 : i32
    %c0_i32_0 = arith.constant 0 : i32
    %c0_i32_1 = arith.constant 0 : i32
    return %c0_i32, %c0_i32_0 : i32, i32
  }
  func.func @transform_5(%arg0: i32) -> (i32, i32) {
    %c0_i32 = arith.constant 0 : i32
    %c0_i32_0 = arith.constant 0 : i32
    %c0_i32_1 = arith.constant 0 : i32
    return %c0_i32, %c0_i32_0 : i32, i32
  }
  func.func @transform_6(%arg0: i32) -> (i32, i32) {
    %c0_i32 = arith.constant 0 : i32
    %c0_i32_0 = arith.constant 0 : i32
    %c0_i32_1 = arith.constant 0 : i32
    return %c0_i32, %c0_i32_0 : i32, i32
  }
  func.func @transform_7(%arg0: i32) -> (i32, i32) {
    %c0_i32 = arith.constant 0 : i32
    %c0_i32_0 = arith.constant 0 : i32
    %c0_i32_1 = arith.constant 0 : i32
    return %c0_i32, %c0_i32_0 : i32, i32
  }
  func.func @transform_8(%arg0: i32) -> (i32, i32) {
    %c0_i32 = arith.constant 0 : i32
    %c0_i32_0 = arith.constant 0 : i32
    %c0_i32_1 = arith.constant 0 : i32
    return %c0_i32, %c0_i32_0 : i32, i32
  }
  func.func @transform_9(%arg0: i32) -> (i32, i32) {
    %c0_i32 = arith.constant 0 : i32
    %c0_i32_0 = arith.constant 0 : i32
    %c0_i32_1 = arith.constant 0 : i32
    return %c0_i32, %c0_i32_0 : i32, i32
  }
  func.func @transform_10(%arg0: i32) -> (i32, i32) {
    %c0_i32 = arith.constant 0 : i32
    %c0_i32_0 = arith.constant 0 : i32
    %c0_i32_1 = arith.constant 0 : i32
    return %c0_i32, %c0_i32_0 : i32, i32
  }
  func.func @transform_11(%arg0: i32) -> (i32, i32) {
    %c0_i32 = arith.constant 0 : i32
    %c0_i32_0 = arith.constant 0 : i32
    return %arg0, %c0_i32 : i32, i32
  }
}

module attributes {stable_mosaic.version = 11 : i64} {
  func.func @kernel(%arg0: i32, %arg1: memref<64x3xf32, #tpu.memory_space<vmem>>, %arg2: memref<3x128xf32, #tpu.memory_space<vmem>>, %arg3: memref<1x128xf32, #tpu.memory_space<vmem>>, %arg4: memref<128x128xf32, #tpu.memory_space<vmem>>, %arg5: memref<1x128xf32, #tpu.memory_space<vmem>>, %arg6: memref<128x128xf32, #tpu.memory_space<vmem>>, %arg7: memref<1x128xf32, #tpu.memory_space<vmem>>, %arg8: memref<128x128xf32, #tpu.memory_space<vmem>>, %arg9: memref<1x128xf32, #tpu.memory_space<vmem>>, %arg10: memref<128x128xf32, #tpu.memory_space<vmem>>, %arg11: memref<1x128xf32, #tpu.memory_space<vmem>>, %arg12: memref<64x128xf32, #tpu.memory_space<vmem>>) attributes {dimension_semantics = [#tpu.dimension_semantics<parallel>], iteration_bounds = array<i64: 2>, scalar_prefetch = 0 : i64, scratch_operands = 0 : i64, tpu.core_type = #tpu.core_type<tc>, window_params = [{transform_indices = @transform_0, window_bounds = array<i64: 64, 3>}, {pipeline_mode = #tpu.pipeline_mode<synchronous>, transform_indices = @transform_1, window_bounds = array<i64: 3, 128>}, {pipeline_mode = #tpu.pipeline_mode<synchronous>, transform_indices = @transform_2, window_bounds = array<i64: 1, 128>}, {pipeline_mode = #tpu.pipeline_mode<synchronous>, transform_indices = @transform_3, window_bounds = array<i64: 128, 128>}, {pipeline_mode = #tpu.pipeline_mode<synchronous>, transform_indices = @transform_4, window_bounds = array<i64: 1, 128>}, {pipeline_mode = #tpu.pipeline_mode<synchronous>, transform_indices = @transform_5, window_bounds = array<i64: 128, 128>}, {pipeline_mode = #tpu.pipeline_mode<synchronous>, transform_indices = @transform_6, window_bounds = array<i64: 1, 128>}, {pipeline_mode = #tpu.pipeline_mode<synchronous>, transform_indices = @transform_7, window_bounds = array<i64: 128, 128>}, {pipeline_mode = #tpu.pipeline_mode<synchronous>, transform_indices = @transform_8, window_bounds = array<i64: 1, 128>}, {pipeline_mode = #tpu.pipeline_mode<synchronous>, transform_indices = @transform_9, window_bounds = array<i64: 128, 128>}, {pipeline_mode = #tpu.pipeline_mode<synchronous>, transform_indices = @transform_10, window_bounds = array<i64: 1, 128>}, {transform_indices = @transform_11, window_bounds = array<i64: 64, 128>}]} {
    %c0 = arith.constant 0 : index
    %c0_0 = arith.constant 0 : index
    %0 = vector.load %arg1[%c0, %c0_0] : memref<64x3xf32, #tpu.memory_space<vmem>>, vector<64x3xf32>
    %c0_1 = arith.constant 0 : index
    %c0_2 = arith.constant 0 : index
    %1 = vector.load %arg2[%c0_1, %c0_2] : memref<3x128xf32, #tpu.memory_space<vmem>>, vector<3x128xf32>
    %c0_3 = arith.constant 0 : index
    %c0_4 = arith.constant 0 : index
    %2 = vector.load %arg3[%c0_3, %c0_4] : memref<1x128xf32, #tpu.memory_space<vmem>>, vector<1x128xf32>
    %cst = arith.constant dense<0.000000e+00> : vector<64x128xf32>
    %3 = tpu.matmul %0, %1, %cst {dimension_numbers = #tpu.dot_dimension_numbers<[1], [0], [0], [1], [0, 0, 1, 1], [], []>} : vector<64x3xf32>, vector<3x128xf32>, vector<64x128xf32> -> vector<64x128xf32>
    %4 = vector.broadcast %2 : vector<1x128xf32> to vector<64x128xf32>
    %5 = arith.addf %3, %4 : vector<64x128xf32>
    %6 = math.tanh %5 : vector<64x128xf32>
    %c0_5 = arith.constant 0 : index
    %c0_6 = arith.constant 0 : index
    %7 = vector.load %arg4[%c0_5, %c0_6] : memref<128x128xf32, #tpu.memory_space<vmem>>, vector<128x128xf32>
    %c0_7 = arith.constant 0 : index
    %c0_8 = arith.constant 0 : index
    %8 = vector.load %arg5[%c0_7, %c0_8] : memref<1x128xf32, #tpu.memory_space<vmem>>, vector<1x128xf32>
    %cst_9 = arith.constant dense<0.000000e+00> : vector<64x128xf32>
    %9 = tpu.matmul %6, %7, %cst_9 {dimension_numbers = #tpu.dot_dimension_numbers<[1], [0], [0], [1], [0, 0, 1, 1], [], []>} : vector<64x128xf32>, vector<128x128xf32>, vector<64x128xf32> -> vector<64x128xf32>
    %10 = vector.broadcast %8 : vector<1x128xf32> to vector<64x128xf32>
    %11 = arith.addf %9, %10 : vector<64x128xf32>
    %12 = math.tanh %11 : vector<64x128xf32>
    %c0_10 = arith.constant 0 : index
    %c0_11 = arith.constant 0 : index
    %13 = vector.load %arg6[%c0_10, %c0_11] : memref<128x128xf32, #tpu.memory_space<vmem>>, vector<128x128xf32>
    %c0_12 = arith.constant 0 : index
    %c0_13 = arith.constant 0 : index
    %14 = vector.load %arg7[%c0_12, %c0_13] : memref<1x128xf32, #tpu.memory_space<vmem>>, vector<1x128xf32>
    %cst_14 = arith.constant dense<0.000000e+00> : vector<64x128xf32>
    %15 = tpu.matmul %12, %13, %cst_14 {dimension_numbers = #tpu.dot_dimension_numbers<[1], [0], [0], [1], [0, 0, 1, 1], [], []>} : vector<64x128xf32>, vector<128x128xf32>, vector<64x128xf32> -> vector<64x128xf32>
    %16 = vector.broadcast %14 : vector<1x128xf32> to vector<64x128xf32>
    %17 = arith.addf %15, %16 : vector<64x128xf32>
    %18 = math.tanh %17 : vector<64x128xf32>
    %c0_15 = arith.constant 0 : index
    %c0_16 = arith.constant 0 : index
    %19 = vector.load %arg8[%c0_15, %c0_16] : memref<128x128xf32, #tpu.memory_space<vmem>>, vector<128x128xf32>
    %c0_17 = arith.constant 0 : index
    %c0_18 = arith.constant 0 : index
    %20 = vector.load %arg9[%c0_17, %c0_18] : memref<1x128xf32, #tpu.memory_space<vmem>>, vector<1x128xf32>
    %cst_19 = arith.constant dense<0.000000e+00> : vector<64x128xf32>
    %21 = tpu.matmul %18, %19, %cst_19 {dimension_numbers = #tpu.dot_dimension_numbers<[1], [0], [0], [1], [0, 0, 1, 1], [], []>} : vector<64x128xf32>, vector<128x128xf32>, vector<64x128xf32> -> vector<64x128xf32>
    %22 = vector.broadcast %20 : vector<1x128xf32> to vector<64x128xf32>
    %23 = arith.addf %21, %22 : vector<64x128xf32>
    %24 = math.tanh %23 : vector<64x128xf32>
    %c0_20 = arith.constant 0 : index
    %c0_21 = arith.constant 0 : index
    %25 = vector.load %arg10[%c0_20, %c0_21] : memref<128x128xf32, #tpu.memory_space<vmem>>, vector<128x128xf32>
    %c0_22 = arith.constant 0 : index
    %c0_23 = arith.constant 0 : index
    %26 = vector.load %arg11[%c0_22, %c0_23] : memref<1x128xf32, #tpu.memory_space<vmem>>, vector<1x128xf32>
    %cst_24 = arith.constant dense<0.000000e+00> : vector<64x128xf32>
    %27 = tpu.matmul %24, %25, %cst_24 {dimension_numbers = #tpu.dot_dimension_numbers<[1], [0], [0], [1], [0, 0, 1, 1], [], []>} : vector<64x128xf32>, vector<128x128xf32>, vector<64x128xf32> -> vector<64x128xf32>
    %28 = vector.broadcast %26 : vector<1x128xf32> to vector<64x128xf32>
    %29 = arith.addf %27, %28 : vector<64x128xf32>
    %30 = math.tanh %29 : vector<64x128xf32>
    %c0_25 = arith.constant 0 : index
    %c0_26 = arith.constant 0 : index
    %31 = vector.load %arg12[%c0_25, %c0_26] : memref<64x128xf32, #tpu.memory_space<vmem>>, vector<64x128xf32>
    tpu.vector_store %arg12[%c0_25, %c0_26], %30 {strides = array<i32>} : memref<64x128xf32, #tpu.memory_space<vmem>>, vector<64x128xf32>,
    return
  }
  func.func @transform_0(%arg0: i32) -> (i32, i32) {
    %c0_i32 = arith.constant 0 : i32
    %c0_i32_0 = arith.constant 0 : i32
    return %arg0, %c0_i32 : i32, i32
  }
  func.func @transform_1(%arg0: i32) -> (i32, i32) {
    %c0_i32 = arith.constant 0 : i32
    %c0_i32_0 = arith.constant 0 : i32
    %c0_i32_1 = arith.constant 0 : i32
    return %c0_i32, %c0_i32_0 : i32, i32
  }
  func.func @transform_2(%arg0: i32) -> (i32, i32) {
    %c0_i32 = arith.constant 0 : i32
    %c0_i32_0 = arith.constant 0 : i32
    %c0_i32_1 = arith.constant 0 : i32
    return %c0_i32, %c0_i32_0 : i32, i32
  }
  func.func @transform_3(%arg0: i32) -> (i32, i32) {
    %c0_i32 = arith.constant 0 : i32
    %c0_i32_0 = arith.constant 0 : i32
    %c0_i32_1 = arith.constant 0 : i32
    return %c0_i32, %c0_i32_0 : i32, i32
  }
  func.func @transform_4(%arg0: i32) -> (i32, i32) {
    %c0_i32 = arith.constant 0 : i32
    %c0_i32_0 = arith.constant 0 : i32
    %c0_i32_1 = arith.constant 0 : i32
    return %c0_i32, %c0_i32_0 : i32, i32
  }
  func.func @transform_5(%arg0: i32) -> (i32, i32) {
    %c0_i32 = arith.constant 0 : i32
    %c0_i32_0 = arith.constant 0 : i32
    %c0_i32_1 = arith.constant 0 : i32
    return %c0_i32, %c0_i32_0 : i32, i32
  }
  func.func @transform_6(%arg0: i32) -> (i32, i32) {
    %c0_i32 = arith.constant 0 : i32
    %c0_i32_0 = arith.constant 0 : i32
    %c0_i32_1 = arith.constant 0 : i32
    return %c0_i32, %c0_i32_0 : i32, i32
  }
  func.func @transform_7(%arg0: i32) -> (i32, i32) {
    %c0_i32 = arith.constant 0 : i32
    %c0_i32_0 = arith.constant 0 : i32
    %c0_i32_1 = arith.constant 0 : i32
    return %c0_i32, %c0_i32_0 : i32, i32
  }
  func.func @transform_8(%arg0: i32) -> (i32, i32) {
    %c0_i32 = arith.constant 0 : i32
    %c0_i32_0 = arith.constant 0 : i32
    %c0_i32_1 = arith.constant 0 : i32
    return %c0_i32, %c0_i32_0 : i32, i32
  }
  func.func @transform_9(%arg0: i32) -> (i32, i32) {
    %c0_i32 = arith.constant 0 : i32
    %c0_i32_0 = arith.constant 0 : i32
    %c0_i32_1 = arith.constant 0 : i32
    return %c0_i32, %c0_i32_0 : i32, i32
  }
  func.func @transform_10(%arg0: i32) -> (i32, i32) {
    %c0_i32 = arith.constant 0 : i32
    %c0_i32_0 = arith.constant 0 : i32
    %c0_i32_1 = arith.constant 0 : i32
    return %c0_i32, %c0_i32_0 : i32, i32
  }
  func.func @transform_11(%arg0: i32) -> (i32, i32) {
    %c0_i32 = arith.constant 0 : i32
    %c0_i32_0 = arith.constant 0 : i32
    return %arg0, %c0_i32 : i32, i32
  }
}

</mosaic_0001>

<llo_original>
// kernel: tpu_custom_call.1
$region0: #{tpu_custom_call.1}
  #allocation0 [shape = 'u32[]', space=smem, size = 0x4, offset = 0x4, fixed_abs, tag = 'smem constant byte address 0x4 - core index']
  #allocation1 [shape = 'u32[72,128]{1,0:T(1,128)}', space=vmem, size = 0x9000, scoped, tag = 'internal scratch']
  %s0 = inlined_call_operand.vmem [shape: f32[128,3], index: 0, kind: input, shape index: {}]
  %s1 = inlined_call_operand.vmem [shape: f32[3,128], index: 1, kind: input, shape index: {}]
  %s2 = inlined_call_operand.vmem [shape: f32[1,128], index: 2, kind: input, shape index: {}]
  %s3 = inlined_call_operand.vmem [shape: f32[128,128], index: 3, kind: input, shape index: {}]
  %s4 = inlined_call_operand.vmem [shape: f32[1,128], index: 4, kind: input, shape index: {}]
  %s5 = inlined_call_operand.hbm [shape: f32[128,128], index: 5, kind: input, shape index: {}]
  %s6 = inlined_call_operand.vmem [shape: f32[1,128], index: 6, kind: input, shape index: {}]
  %s7 = inlined_call_operand.hbm [shape: f32[128,128], index: 7, kind: input, shape index: {}]
  %s8 = inlined_call_operand.vmem [shape: f32[1,128], index: 8, kind: input, shape index: {}]
  %s9 = inlined_call_operand.hbm [shape: f32[128,128], index: 9, kind: input, shape index: {}]
  %s10 = inlined_call_operand.vmem [shape: f32[1,128], index: 10, kind: input, shape index: {}]
  %s11 = inlined_call_operand.hbm [shape: f32[128,128], index: 11, kind: output, shape index: {}]
  %s12 = sld [smem:[#allocation0]]
  $region89: #{tpu_custom_call.1} parent=0
    _
  %s14 = ssub.s32 1, %s12
  %s15 = scalar_select 0, %s14, %s12
  $region1: #{tpu_custom_call.1} parent=0
    #allocation2 [shape = 'u8[65536]{0}', space=vmem, size = 0x10000, scoped, tag = 'input window, operand 5, single buffered']
    #allocation3 [shape = 's32[2]{0}', space=sflag, size = 0x8, scoped, tag = 'scoped memory for tpu_custom_call.1']
    #allocation4 [shape = 's32[2]{0}', space=sflag, size = 0x8, scoped, tag = 'scoped memory for tpu_custom_call.1']
    #allocation5 [shape = 'u8[65536]{0}', space=vmem, size = 0x10000, scoped, tag = 'input window, operand 7, single buffered']
    #allocation6 [shape = 's32[1]{0}', space=sflag, size = 0x4, scoped, tag = 'scoped memory for tpu_custom_call.1']
    #allocation7 [shape = 'u8[65536]{0}', space=vmem, size = 0x10000, scoped, tag = 'input window, operand 9, single buffered']
    #allocation8 [shape = 'u8[65536]{0}', space=vmem, size = 0x10000, scoped, tag = 'output window, operand 0']
    %16 = vsyncpa [#allocation3], 0
    %17 = vsyncpa [#allocation6], 0
    %18 = vsyncpa [#allocation4], 0
    %s19 = scalar_lea.sflag [#allocation4], 1
    %20 = vsyncpa %s19, 0
    loop: start=0, step=1, limit=4
    $region2: #{tpu_custom_call.1} parent=1 // loop_pre_header
      _
    $region3: #{tpu_custom_call.1} parent=1 // loop_header
      %s22 = sphi 0, %s26
      %p23 = scmp.ge.s32.totalorder %s22, 4
      %s32 = sphi 0, %s34
      %s35 = sphi 0, %s32
      %s36 = sphi 0, %s35
      %s52 = sphi 0, %s36
      %s56 = sphi 0, %s56
      %s58 = sphi 0, %s56
      %s59 = sphi 0, %s58
      %s73 = sphi 0, %s59
      %s77 = sphi 0, %s77
      %s79 = sphi 0, %s77
      %s80 = sphi 0, %s79
      %s94 = sphi 0, %s80
      %s98 = sphi 0, %s98
      %s100 = sphi 0, %s98
      %s101 = sphi 0, %s100
      %s115 = sphi 0, %s101
      %s119 = sphi 0, %s119
      %s121 = sphi 0, %s119
      %s122 = sphi 0, %s121
      %s136 = sphi 0, %s122
      %s140 = sphi 0, %s140
      %s142 = sphi 0, %s140
      %s143 = sphi 0, %s142
      %s157 = sphi 0, %s143
      %s161 = sphi 0, %s161
      %s163 = sphi 0, %s161
      %s164 = sphi 0, %s163
      %s178 = sphi 0, %s164
      %s182 = sphi 0, %s182
      %s184 = sphi 0, %s182
      %s185 = sphi 0, %s184
      %s199 = sphi 0, %s185
      %s203 = sphi 0, %s203
      %s205 = sphi 0, %s203
      %s206 = sphi 0, %s205
      %s220 = sphi 0, %s206
      %s224 = sphi 0, %s224
      %s226 = sphi 0, %s224
      %s227 = sphi 0, %s226
      %s241 = sphi 0, %s227
      %s245 = sphi 0, %s245
      %s247 = sphi 0, %s245
      %s248 = sphi 0, %s247
      %s262 = sphi 0, %s248
      %s268 = sphi 0, %s270
      %s271 = sphi 0, %s268
      %s272 = sphi 0, %s271
      %s288 = sphi 0, %s272
    $region4: #{tpu_custom_call.1} parent=1 // loop_header_branch
      %25 = sbr.rel (%p23) target = $region8
    $region5: #{tpu_custom_call.1} parent=1 // loop_body
      %s27 = ssub.s32 %s22, 1
      %s28 = ssub.s32 %s22, 2
      %s29 = sadd.s32 %s22, 1
      %s30 = ssub.s32 %s22, %s29
      %p31 = scmp.eq.s32.totalorder %s30, 0
      %s33 = sadd.s32 %s32, 1
      %s34 = scalar_select %p31, %s32, %s33
      %p37 = pneg %p31
      %p38 = scmp.eq.s32.totalorder %s22, 1
      %p39 = por %p37, %p38
      %p40 = scmp.ne.s32.totalorder %s32, %s35
      %p41 = scmp.eq.s32.totalorder %s22, 0
      %p42 = por %p40, %p41
      %p43 = scmp.ne.s32.totalorder %s32, %s35
      %p44 = scmp.eq.s32.totalorder %s27, 1
      %p45 = por %p43, %p44
      %p46 = scmp.ne.s32.totalorder %s35, %s36
      %p47 = scmp.eq.s32.totalorder %s27, 0
      %p48 = por %p46, %p47
      %p49 = scmp.ne.s32.totalorder %s35, %s36
      %p50 = scmp.eq.s32.totalorder %s28, 1
      %p51 = por %p49, %p50
      %p53 = scmp.ne.s32.totalorder %s36, %s52
      %p54 = scmp.eq.s32.totalorder %s28, 0
      %p55 = por %p53, %p54
      %s57 = sadd.s32 %s56, 1
      %p60 = scmp.eq.s32.totalorder %s22, 1
      %p61 = scmp.ne.s32.totalorder %s56, %s58
      %p62 = scmp.eq.s32.totalorder %s22, 0
      %p63 = por %p61, %p62
      %p64 = scmp.ne.s32.totalorder %s56, %s58
      %p65 = scmp.eq.s32.totalorder %s27, 1
      %p66 = por %p64, %p65
      %p67 = scmp.ne.s32.totalorder %s58, %s59
      %p68 = scmp.eq.s32.totalorder %s27, 0
      %p69 = por %p67, %p68
      %p70 = scmp.ne.s32.totalorder %s58, %s59
      %p71 = scmp.eq.s32.totalorder %s28, 1
      %p72 = por %p70, %p71
      %p74 = scmp.ne.s32.totalorder %s59, %s73
      %p75 = scmp.eq.s32.totalorder %s28, 0
      %p76 = por %p74, %p75
      %s78 = sadd.s32 %s77, 1
      %p81 = scmp.eq.s32.totalorder %s22, 1
      %p82 = scmp.ne.s32.totalorder %s77, %s79
      %p83 = scmp.eq.s32.totalorder %s22, 0
      %p84 = por %p82, %p83
      %p85 = scmp.ne.s32.totalorder %s77, %s79
      %p86 = scmp.eq.s32.totalorder %s27, 1
      %p87 = por %p85, %p86
      %p88 = scmp.ne.s32.totalorder %s79, %s80
      %p89 = scmp.eq.s32.totalorder %s27, 0
      %p90 = por %p88, %p89
      %p91 = scmp.ne.s32.totalorder %s79, %s80
      %p92 = scmp.eq.s32.totalorder %s28, 1
      %p93 = por %p91, %p92
      %p95 = scmp.ne.s32.totalorder %s80, %s94
      %p96 = scmp.eq.s32.totalorder %s28, 0
      %p97 = por %p95, %p96
      %s99 = sadd.s32 %s98, 1
      %p102 = scmp.eq.s32.totalorder %s22, 1
      %p103 = scmp.ne.s32.totalorder %s98, %s100
      %p104 = scmp.eq.s32.totalorder %s22, 0
      %p105 = por %p103, %p104
      %p106 = scmp.ne.s32.totalorder %s98, %s100
      %p107 = scmp.eq.s32.totalorder %s27, 1
      %p108 = por %p106, %p107
      %p109 = scmp.ne.s32.totalorder %s100, %s101
      %p110 = scmp.eq.s32.totalorder %s27, 0
      %p111 = por %p109, %p110
      %p112 = scmp.ne.s32.totalorder %s100, %s101
      %p113 = scmp.eq.s32.totalorder %s28, 1
      %p114 = por %p112, %p113
      %p116 = scmp.ne.s32.totalorder %s101, %s115
      %p117 = scmp.eq.s32.totalorder %s28, 0
      %p118 = por %p116, %p117
      %s120 = sadd.s32 %s119, 1
      %p123 = scmp.eq.s32.totalorder %s22, 1
      %p124 = scmp.ne.s32.totalorder %s119, %s121
      %p125 = scmp.eq.s32.totalorder %s22, 0
      %p126 = por %p124, %p125
      %p127 = scmp.ne.s32.totalorder %s119, %s121
      %p128 = scmp.eq.s32.totalorder %s27, 1
      %p129 = por %p127, %p128
      %p130 = scmp.ne.s32.totalorder %s121, %s122
      %p131 = scmp.eq.s32.totalorder %s27, 0
      %p132 = por %p130, %p131
      %p133 = scmp.ne.s32.totalorder %s121, %s122
      %p134 = scmp.eq.s32.totalorder %s28, 1
      %p135 = por %p133, %p134
      %p137 = scmp.ne.s32.totalorder %s122, %s136
      %p138 = scmp.eq.s32.totalorder %s28, 0
      %p139 = por %p137, %p138
      %s141 = sadd.s32 %s140, 1
      %p144 = scmp.eq.s32.totalorder %s22, 1
      %p145 = scmp.ne.s32.totalorder %s140, %s142
      %p146 = scmp.eq.s32.totalorder %s22, 0
      %p147 = por %p145, %p146
      %p148 = scmp.ne.s32.totalorder %s140, %s142
      %p149 = scmp.eq.s32.totalorder %s27, 1
      %p150 = por %p148, %p149
      %p151 = scmp.ne.s32.totalorder %s142, %s143
      %p152 = scmp.eq.s32.totalorder %s27, 0
      %p153 = por %p151, %p152
      %p154 = scmp.ne.s32.totalorder %s142, %s143
      %p155 = scmp.eq.s32.totalorder %s28, 1
      %p156 = por %p154, %p155
      %p158 = scmp.ne.s32.totalorder %s143, %s157
      %p159 = scmp.eq.s32.totalorder %s28, 0
      %p160 = por %p158, %p159
      %s162 = sadd.s32 %s161, 1
      %p165 = scmp.eq.s32.totalorder %s22, 1
      %p166 = scmp.ne.s32.totalorder %s161, %s163
      %p167 = scmp.eq.s32.totalorder %s22, 0
      %p168 = por %p166, %p167
      %p169 = scmp.ne.s32.totalorder %s161, %s163
      %p170 = scmp.eq.s32.totalorder %s27, 1
      %p171 = por %p169, %p170
      %p172 = scmp.ne.s32.totalorder %s163, %s164
      %p173 = scmp.eq.s32.totalorder %s27, 0
      %p174 = por %p172, %p173
      %p175 = scmp.ne.s32.totalorder %s163, %s164
      %p176 = scmp.eq.s32.totalorder %s28, 1
      %p177 = por %p175, %p176
      %p179 = scmp.ne.s32.totalorder %s164, %s178
      %p180 = scmp.eq.s32.totalorder %s28, 0
      %p181 = por %p179, %p180
      %s183 = sadd.s32 %s182, 1
      %p186 = scmp.eq.s32.totalorder %s22, 1
      %p187 = scmp.ne.s32.totalorder %s182, %s184
      %p188 = scmp.eq.s32.totalorder %s22, 0
      %p189 = por %p187, %p188
      %p190 = scmp.ne.s32.totalorder %s182, %s184
      %p191 = scmp.eq.s32.totalorder %s27, 1
      %p192 = por %p190, %p191
      %p193 = scmp.ne.s32.totalorder %s184, %s185
      %p194 = scmp.eq.s32.totalorder %s27, 0
      %p195 = por %p193, %p194
      %p196 = scmp.ne.s32.totalorder %s184, %s185
      %p197 = scmp.eq.s32.totalorder %s28, 1
      %p198 = por %p196, %p197
      %p200 = scmp.ne.s32.totalorder %s185, %s199
      %p201 = scmp.eq.s32.totalorder %s28, 0
      %p202 = por %p200, %p201
      %s204 = sadd.s32 %s203, 1
      %p207 = scmp.eq.s32.totalorder %s22, 1
      %p208 = scmp.ne.s32.totalorder %s203, %s205
      %p209 = scmp.eq.s32.totalorder %s22, 0
      %p210 = por %p208, %p209
      %p211 = scmp.ne.s32.totalorder %s203, %s205
      %p212 = scmp.eq.s32.totalorder %s27, 1
      %p213 = por %p211, %p212
      %p214 = scmp.ne.s32.totalorder %s205, %s206
      %p215 = scmp.eq.s32.totalorder %s27, 0
      %p216 = por %p214, %p215
      %p217 = scmp.ne.s32.totalorder %s205, %s206
      %p218 = scmp.eq.s32.totalorder %s28, 1
      %p219 = por %p217, %p218
      %p221 = scmp.ne.s32.totalorder %s206, %s220
      %p222 = scmp.eq.s32.totalorder %s28, 0
      %p223 = por %p221, %p222
      %s225 = sadd.s32 %s224, 1
      %p228 = scmp.eq.s32.totalorder %s22, 1
      %p229 = scmp.ne.s32.totalorder %s224, %s226
      %p230 = scmp.eq.s32.totalorder %s22, 0
      %p231 = por %p229, %p230
      %p232 = scmp.ne.s32.totalorder %s224, %s226
      %p233 = scmp.eq.s32.totalorder %s27, 1
      %p234 = por %p232, %p233
      %p235 = scmp.ne.s32.totalorder %s226, %s227
      %p236 = scmp.eq.s32.totalorder %s27, 0
      %p237 = por %p235, %p236
      %p238 = scmp.ne.s32.totalorder %s226, %s227
      %p239 = scmp.eq.s32.totalorder %s28, 1
      %p240 = por %p238, %p239
      %p242 = scmp.ne.s32.totalorder %s227, %s241
      %p243 = scmp.eq.s32.totalorder %s28, 0
      %p244 = por %p242, %p243
      %s246 = sadd.s32 %s245, 1
      %p249 = scmp.eq.s32.totalorder %s22, 1
      %p250 = scmp.ne.s32.totalorder %s245, %s247
      %p251 = scmp.eq.s32.totalorder %s22, 0
      %p252 = por %p250, %p251
      %p253 = scmp.ne.s32.totalorder %s245, %s247
      %p254 = scmp.eq.s32.totalorder %s27, 1
      %p255 = por %p253, %p254
      %p256 = scmp.ne.s32.totalorder %s247, %s248
      %p257 = scmp.eq.s32.totalorder %s27, 0
      %p258 = por %p256, %p257
      %p259 = scmp.ne.s32.totalorder %s247, %s248
      %p260 = scmp.eq.s32.totalorder %s28, 1
      %p261 = por %p259, %p260
      %p263 = scmp.ne.s32.totalorder %s248, %s262
      %p264 = scmp.eq.s32.totalorder %s28, 0
      %p265 = por %p263, %p264
      %s266 = ssub.s32 %s22, %s29
      %p267 = scmp.eq.s32.totalorder %s266, 0
      %s269 = sadd.s32 %s268, 1
      %s270 = scalar_select %p267, %s268, %s269
      %p273 = pneg %p267
      %p274 = scmp.eq.s32.totalorder %s22, 1
      %p275 = por %p273, %p274
      %p276 = scmp.ne.s32.totalorder %s268, %s271
      %p277 = scmp.eq.s32.totalorder %s22, 0
      %p278 = por %p276, %p277
      %p279 = scmp.ne.s32.totalorder %s268, %s271
      %p280 = scmp.eq.s32.totalorder %s27, 1
      %p281 = por %p279, %p280
      %p282 = scmp.ne.s32.totalorder %s271, %s272
      %p283 = scmp.eq.s32.totalorder %s27, 0
      %p284 = por %p282, %p283
      %p285 = scmp.ne.s32.totalorder %s271, %s272
      %p286 = scmp.eq.s32.totalorder %s28, 1
      %p287 = por %p285, %p286
      %p289 = scmp.ne.s32.totalorder %s272, %s288
      %p290 = scmp.eq.s32.totalorder %s28, 0
      %p291 = por %p289, %p290
      %p292 = scmp.le.s32.totalorder 1, %s22
      %p293 = scmp.lt.s32.totalorder %s22, 3
      %p294 = pnand %p292, %p293
      %p295 = pneg %p294
      // Predicated region
      $region9: #{tpu_custom_call.1} parent=5 // pred_check
        _
      $region10: #{tpu_custom_call.1} parent=5 // pred_check_branch
        %297 = sbr.rel (%p294) target = $region12
      $region11: #{tpu_custom_call.1} parent=5 // pred_region
        %s298 = ssub.s32 %s22, 1
        // Predicated region
        $region13: #{tpu_custom_call.1} parent=11 // pred_check
          %p299 = pneg %p69
        $region14: #{tpu_custom_call.1} parent=11 // pred_check_branch
          %301 = sbr.rel (%p299) target = $region16
        $region15: #{tpu_custom_call.1} parent=11 // pred_region
          _
        $region16: #{tpu_custom_call.1} parent=11 // pred_fallthru
          _
        // Predicated region
        $region17: #{tpu_custom_call.1} parent=11 // pred_check
          %p302 = pneg %p90
        $region18: #{tpu_custom_call.1} parent=11 // pred_check_branch
          %304 = sbr.rel (%p302) target = $region20
        $region19: #{tpu_custom_call.1} parent=11 // pred_region
          _
        $region20: #{tpu_custom_call.1} parent=11 // pred_fallthru
          _
        // Predicated region
        $region21: #{tpu_custom_call.1} parent=11 // pred_check
          %p305 = pneg %p111
        $region22: #{tpu_custom_call.1} parent=11 // pred_check_branch
          %307 = sbr.rel (%p305) target = $region24
        $region23: #{tpu_custom_call.1} parent=11 // pred_region
          _
        $region24: #{tpu_custom_call.1} parent=11 // pred_fallthru
          _
        // Predicated region
        $region25: #{tpu_custom_call.1} parent=11 // pred_check
          %p308 = pneg %p132
        $region26: #{tpu_custom_call.1} parent=11 // pred_check_branch
          %310 = sbr.rel (%p308) target = $region28
        $region27: #{tpu_custom_call.1} parent=11 // pred_region
          _
        $region28: #{tpu_custom_call.1} parent=11 // pred_fallthru
          _
        // Predicated region
        $region29: #{tpu_custom_call.1} parent=11 // pred_check
          %p311 = pneg %p153
        $region30: #{tpu_custom_call.1} parent=11 // pred_check_branch
          %313 = sbr.rel (%p311) target = $region32
        $region31: #{tpu_custom_call.1} parent=11 // pred_region
          %315 = vsyncadd [#allocation3], 0
          %s316 = sshll.u32 %s5, 4
          %s317 = int_to_ptr.hbm [resolvable:$true] %s316
          %s318 = sshll.u32 [#allocation2], 4
          %s319 = int_to_ptr.vmem [resolvable:$true] %s318
          %324 = dma.hbm_to_vmem [thread:$0]  %s317, 2048, %s319, [#allocation3], 128, 128, 8
        $region32: #{tpu_custom_call.1} parent=11 // pred_fallthru
          _
        // Predicated region
        $region33: #{tpu_custom_call.1} parent=11 // pred_check
          %p325 = pneg %p174
        $region34: #{tpu_custom_call.1} parent=11 // pred_check_branch
          %327 = sbr.rel (%p325) target = $region36
        $region35: #{tpu_custom_call.1} parent=11 // pred_region
          _
        $region36: #{tpu_custom_call.1} parent=11 // pred_fallthru
          _
        // Predicated region
        $region37: #{tpu_custom_call.1} parent=11 // pred_check
          %p328 = pneg %p195
        $region38: #{tpu_custom_call.1} parent=11 // pred_check_branch
          %330 = sbr.rel (%p328) target = $region40
        $region39: #{tpu_custom_call.1} parent=11 // pred_region
          %332 = vsyncadd [#allocation6], 0
          %s333 = sshll.u32 %s7, 4
          %s334 = int_to_ptr.hbm [resolvable:$true] %s333
          %s335 = sshll.u32 [#allocation5], 4
          %s336 = int_to_ptr.vmem [resolvable:$true] %s335
          %341 = dma.hbm_to_vmem [thread:$0]  %s334, 2048, %s336, [#allocation6], 128, 128, 8
        $region40: #{tpu_custom_call.1} parent=11 // pred_fallthru
          _
        // Predicated region
        $region41: #{tpu_custom_call.1} parent=11 // pred_check
          %p342 = pneg %p216
        $region42: #{tpu_custom_call.1} parent=11 // pred_check_branch
          %344 = sbr.rel (%p342) target = $region44
        $region43: #{tpu_custom_call.1} parent=11 // pred_region
          _
        $region44: #{tpu_custom_call.1} parent=11 // pred_fallthru
          _
        // Predicated region
        $region45: #{tpu_custom_call.1} parent=11 // pred_check
          %p345 = pneg %p237
        $region46: #{tpu_custom_call.1} parent=11 // pred_check_branch
          %347 = sbr.rel (%p345) target = $region48
        $region47: #{tpu_custom_call.1} parent=11 // pred_region
          %349 = vsyncadd [#allocation6], 0
          %s350 = sshll.u32 %s9, 4
          %s351 = int_to_ptr.hbm [resolvable:$true] %s350
          %s352 = sshll.u32 [#allocation7], 4
          %s353 = int_to_ptr.vmem [resolvable:$true] %s352
          %358 = dma.hbm_to_vmem [thread:$0]  %s351, 2048, %s353, [#allocation6], 128, 128, 8
        $region48: #{tpu_custom_call.1} parent=11 // pred_fallthru
          _
        // Predicated region
        $region49: #{tpu_custom_call.1} parent=11 // pred_check
          %p359 = pneg %p258
        $region50: #{tpu_custom_call.1} parent=11 // pred_check_branch
          %361 = sbr.rel (%p359) target = $region52
        $region51: #{tpu_custom_call.1} parent=11 // pred_region
          _
        $region52: #{tpu_custom_call.1} parent=11 // pred_fallthru
          _
      $region12: #{tpu_custom_call.1} parent=5 // pred_fallthru
        _
      %p362 = scmp.lt.s32.totalorder %s22, 2
      // Predicated region
      $region53: #{tpu_custom_call.1} parent=5 // pred_check
        %p363 = pneg %p362
      $region54: #{tpu_custom_call.1} parent=5 // pred_check_branch
        %365 = sbr.rel (%p363) target = $region56
      $region55: #{tpu_custom_call.1} parent=5 // pred_region
        // Predicated region
        $region57: #{tpu_custom_call.1} parent=55 // pred_check
          %p366 = pneg %p42
        $region58: #{tpu_custom_call.1} parent=55 // pred_check_branch
          %368 = sbr.rel (%p366) target = $region60
        $region59: #{tpu_custom_call.1} parent=55 // pred_region
          %s369 = smul.u32 8, %s22
          %p370 = scmp.lt.s32.totalorder %s369, 15
          %s371 = scalar_select %p370, %s369, 15
          %s372 = smul.addr %s371, 8
          %s373 = scalar_lea.vmem %s0, %s372
          %s374 = smul.u32 8, %s22
        $region60: #{tpu_custom_call.1} parent=55 // pred_fallthru
          _
      $region56: #{tpu_custom_call.1} parent=5 // pred_fallthru
        _
      %p375 = scmp.le.s32.totalorder 1, %s22
      %p376 = scmp.lt.s32.totalorder %s22, 3
      %p377 = pnand %p375, %p376
      %p378 = pneg %p377
      // Predicated region
      $region61: #{tpu_custom_call.1} parent=5 // pred_check
        _
      $region62: #{tpu_custom_call.1} parent=5 // pred_check_branch
        %380 = sbr.rel (%p377) target = $region64
      $region63: #{tpu_custom_call.1} parent=5 // pred_region
        %s381 = ssub.s32 %s22, 1
        // Predicated region
        $region65: #{tpu_custom_call.1} parent=63 // pred_check
          %p382 = pneg %p153
        $region66: #{tpu_custom_call.1} parent=63 // pred_check_branch
          %384 = sbr.rel (%p382) target = $region68
        $region67: #{tpu_custom_call.1} parent=63 // pred_region
          %386 = dma.done [#allocation3], 2048
        $region68: #{tpu_custom_call.1} parent=63 // pred_fallthru
          _
        // Predicated region
        $region69: #{tpu_custom_call.1} parent=63 // pred_check
          %p387 = pneg %p195
        $region70: #{tpu_custom_call.1} parent=63 // pred_check_branch
          %389 = sbr.rel (%p387) target = $region72
        $region71: #{tpu_custom_call.1} parent=63 // pred_region
          %391 = dma.done [#allocation6], 2048
        $region72: #{tpu_custom_call.1} parent=63 // pred_fallthru
          _
        // Predicated region
        $region73: #{tpu_custom_call.1} parent=63 // pred_check
          %p392 = pneg %p237
        $region74: #{tpu_custom_call.1} parent=63 // pred_check_branch
          %394 = sbr.rel (%p392) target = $region76
        $region75: #{tpu_custom_call.1} parent=63 // pred_region
          %396 = dma.done [#allocation6], 2048
        $region76: #{tpu_custom_call.1} parent=63 // pred_fallthru
          _
        %s397 = smul.u32 8, %s27
        %p398 = scmp.lt.s32.totalorder %s397, 15
        %s399 = scalar_select %p398, %s397, 15
        %s400 = smul.addr %s399, 8
        %s401 = scalar_lea.vmem %s0, %s400
        %p402 = pneg %p48
        %p403 = pneg %p45
        %p404 = pneg %p69
        %p405 = pneg %p66
        %p406 = pneg %p90
        %p407 = pneg %p87
        %p408 = pneg %p111
        %p409 = pneg %p108
        %p410 = pneg %p132
        %p411 = pneg %p129
        %p412 = pneg %p153
        %p413 = pneg %p150
        %p414 = pneg %p174
        %p415 = pneg %p171
        %p416 = pneg %p195
        %p417 = pneg %p192
        %p418 = pneg %p216
        %p419 = pneg %p213
        %p420 = pneg %p237
        %p421 = pneg %p234
        %p422 = pneg %p258
        %p423 = pneg %p255
        %p424 = pneg %p284
        %p425 = pneg %p281
        %s426 = sand.u32 %s271, 1
        %s427 = scalar_lea.sflag [#allocation4], %s426
        %s428 = sand.u32 %s271, 1
        %s429 = smul.addr %s428, 64
        %s430 = scalar_lea.vmem [#allocation8], %s429
        %s431 = smul.u32 8, %s27
        %p432 = scmp.lt.s32.totalorder %s431, 15
        %s433 = scalar_select %p432, %s431, 15
        %s434 = smul.addr %s433, 8
        %s435 = scalar_lea.vmem %s0, %s434
        %s436 = smul.u32 8, %s27
        %s437 = smul.u32 8, %s27
        %v438 = vld [vmem:[%s435] sm:$0xff]
        %v439 = vld [vmem:[%s435 + $0x8] sm:$0xff]
        %v440 = vld [vmem:[%s435 + $0x10] sm:$0xff]
        %v441 = vld [vmem:[%s435 + $0x18] sm:$0xff]
        %v442 = vld [vmem:[%s435 + $0x20] sm:$0xff]
        %v443 = vld [vmem:[%s435 + $0x28] sm:$0xff]
        %v444 = vld [vmem:[%s435 + $0x30] sm:$0xff]
        %v445 = vld [vmem:[%s435 + $0x38] sm:$0xff]
        %v446 = vld [vmem:[%s1] sm:$0x7]
        %v447 = vld [vmem:[%s2] sm:$0x1]
        %v449 = vperm.slane %v447, 0
        %vm451 = vcmask 23552
        %v453 = vsel %vm451, %v438, 0
        %v456 = vsel %vm451, %v439, 0
        %v459 = vsel %vm451, %v440, 0
        %v462 = vsel %vm451, %v441, 0
        %v465 = vsel %vm451, %v442, 0
        %v468 = vsel %vm451, %v443, 0
        %v471 = vsel %vm451, %v444, 0
        %v474 = vsel %vm451, %v445, 0
        %vm476 = vcmask 1042432
        %v478 = vsel %vm476, %v446, 0
        %480 = vmatpush.msra.mxu0 0.0
        %481 = vmatpush.msra.mxu0 0.0
        %482 = vmatpush.msra.mxu0 0.0
        %483 = vmatpush.msra.mxu0 0.0
        %484 = vmatpush.msra.mxu0 0.0
        %485 = vmatpush.msra.mxu0 0.0
        %486 = vmatpush.msra.mxu0 0.0
        %487 = vmatpush.msra.mxu0 0.0
        %488 = vmatpush.msra.mxu0 0.0
        %489 = vmatpush.msra.mxu0 0.0
        %490 = vmatpush.msra.mxu0 0.0
        %491 = vmatpush.msra.mxu0 0.0
        %492 = vmatpush.msra.mxu0 0.0
        %493 = vmatpush.msra.mxu0 0.0
        %494 = vmatpush.msra.mxu0 0.0
        %495 = vmatpush.msra.mxu0 %v478
        %496 = vmatmul.f32.gmra.mxu0 %v453
        %v497 = vpop.f32.mrf.mxu0
        %v498 = vadd.f32 %v449, %v497
        %499 = vmatmul.f32.gmra.mxu0 %v456
        %v500 = vpop.f32.mrf.mxu0
        %v501 = vadd.f32 %v449, %v500
        %502 = vmatmul.f32.gmra.mxu0 %v459
        %v503 = vpop.f32.mrf.mxu0
        %v504 = vadd.f32 %v449, %v503
        %505 = vmatmul.f32.gmra.mxu0 %v462
        %v506 = vpop.f32.mrf.mxu0
        %v507 = vadd.f32 %v449, %v506
        %508 = vmatmul.f32.gmra.mxu0 %v465
        %v509 = vpop.f32.mrf.mxu0
        %v510 = vadd.f32 %v449, %v509
        %511 = vmatmul.f32.gmra.mxu0 %v468
        %v512 = vpop.f32.mrf.mxu0
        %v513 = vadd.f32 %v449, %v512
        %514 = vmatmul.f32.gmra.mxu0 %v471
        %v515 = vpop.f32.mrf.mxu0
        %v516 = vadd.f32 %v449, %v515
        %517 = vmatmul.f32.gmra.mxu0 %v474
        %v518 = vpop.f32.mrf.mxu0
        %v519 = vadd.f32 %v449, %v518
        %520 = vdwg.mxu0
        %v521 = vtanh.pop %v498
        %v522 = vtanh.pop %v501
        %v523 = vtanh.pop %v504
        %v524 = vtanh.pop %v507
        %v525 = vtanh.pop %v510
        %v526 = vtanh.pop %v513
        %v527 = vtanh.pop %v516
        %v528 = vtanh.pop %v519
        %v529 = vld [vmem:[%s3] sm:$0xff]
        %v530 = vld [vmem:[%s3 + $0x8] sm:$0xff]
        %v531 = vld [vmem:[%s3 + $0x10] sm:$0xff]
        %v532 = vld [vmem:[%s3 + $0x18] sm:$0xff]
        %v533 = vld [vmem:[%s3 + $0x20] sm:$0xff]
        %v534 = vld [vmem:[%s3 + $0x28] sm:$0xff]
        %v535 = vld [vmem:[%s3 + $0x30] sm:$0xff]
        %v536 = vld [vmem:[%s3 + $0x38] sm:$0xff]
        %v537 = vld [vmem:[%s3 + $0x40] sm:$0xff]
        %v538 = vld [vmem:[%s3 + $0x48] sm:$0xff]
        %v539 = vld [vmem:[%s3 + $0x50] sm:$0xff]
        %v540 = vld [vmem:[%s3 + $0x58] sm:$0xff]
        %v541 = vld [vmem:[%s3 + $0x60] sm:$0xff]
        %v542 = vld [vmem:[%s3 + $0x68] sm:$0xff]
        %v543 = vld [vmem:[%s3 + $0x70] sm:$0xff]
        %v544 = vld [vmem:[%s3 + $0x78] sm:$0xff]
        %v545 = vld [vmem:[%s4] sm:$0x1]
        %v547 = vperm.slane %v545, 0
        %549 = vmatpush.msra.mxu0 %v544
        %550 = vmatpush.msra.mxu0 %v543
        %551 = vmatpush.msra.mxu0 %v542
        %552 = vmatpush.msra.mxu0 %v541
        %553 = vmatpush.msra.mxu0 %v540
        %554 = vmatpush.msra.mxu0 %v539
        %555 = vmatpush.msra.mxu0 %v538
        %556 = vmatpush.msra.mxu0 %v537
        %557 = vmatpush.msra.mxu0 %v536
        %558 = vmatpush.msra.mxu0 %v535
        %559 = vmatpush.msra.mxu0 %v534
        %560 = vmatpush.msra.mxu0 %v533
        %561 = vmatpush.msra.mxu0 %v532
        %562 = vmatpush.msra.mxu0 %v531
        %563 = vmatpush.msra.mxu0 %v530
        %564 = vmatpush.msra.mxu0 %v529
        %565 = vmatmul.f32.gmra.mxu0 %v521
        %v566 = vpop.f32.mrf.mxu0
        %v567 = vadd.f32 %v547, %v566
        %568 = vmatmul.f32.gmra.mxu0 %v522
        %v569 = vpop.f32.mrf.mxu0
        %v570 = vadd.f32 %v547, %v569
        %571 = vmatmul.f32.gmra.mxu0 %v523
        %v572 = vpop.f32.mrf.mxu0
        %v573 = vadd.f32 %v547, %v572
        %574 = vmatmul.f32.gmra.mxu0 %v524
        %v575 = vpop.f32.mrf.mxu0
        %v576 = vadd.f32 %v547, %v575
        %577 = vmatmul.f32.gmra.mxu0 %v525
        %v578 = vpop.f32.mrf.mxu0
        %v579 = vadd.f32 %v547, %v578
        %580 = vmatmul.f32.gmra.mxu0 %v526
        %v581 = vpop.f32.mrf.mxu0
        %v582 = vadd.f32 %v547, %v581
        %583 = vmatmul.f32.gmra.mxu0 %v527
        %v584 = vpop.f32.mrf.mxu0
        %v585 = vadd.f32 %v547, %v584
        %586 = vmatmul.f32.gmra.mxu0 %v528
        %v587 = vpop.f32.mrf.mxu0
        %v588 = vadd.f32 %v547, %v587
        %589 = vdwg.mxu0
        %v590 = vtanh.pop %v567
        %v591 = vtanh.pop %v570
        %v592 = vtanh.pop %v573
        %v593 = vtanh.pop %v576
        %v594 = vtanh.pop %v579
        %v595 = vtanh.pop %v582
        %v596 = vtanh.pop %v585
        %v597 = vtanh.pop %v588
        %v598 = vld [vmem:[#allocation2] sm:$0xff]
        %v599 = vld [vmem:[#allocation2 + $0x8] sm:$0xff]
        %v600 = vld [vmem:[#allocation2 + $0x10] sm:$0xff]
        %v601 = vld [vmem:[#allocation2 + $0x18] sm:$0xff]
        %v602 = vld [vmem:[#allocation2 + $0x20] sm:$0xff]
        %v603 = vld [vmem:[#allocation2 + $0x28] sm:$0xff]
        %v604 = vld [vmem:[#allocation2 + $0x30] sm:$0xff]
        %v605 = vld [vmem:[#allocation2 + $0x38] sm:$0xff]
        %v606 = vld [vmem:[#allocation2 + $0x40] sm:$0xff]
        %v607 = vld [vmem:[#allocation2 + $0x48] sm:$0xff]
        %v608 = vld [vmem:[#allocation2 + $0x50] sm:$0xff]
        %v609 = vld [vmem:[#allocation2 + $0x58] sm:$0xff]
        %v610 = vld [vmem:[#allocation2 + $0x60] sm:$0xff]
        %v611 = vld [vmem:[#allocation2 + $0x68] sm:$0xff]
        %v612 = vld [vmem:[#allocation2 + $0x70] sm:$0xff]
        %v613 = vld [vmem:[#allocation2 + $0x78] sm:$0xff]
        %v614 = vld [vmem:[%s6] sm:$0x1]
        %v616 = vperm.slane %v614, 0
        %618 = vmatpush.msra.mxu0 %v613
        %619 = vmatpush.msra.mxu0 %v612
        %620 = vmatpush.msra.mxu0 %v611
        %621 = vmatpush.msra.mxu0 %v610
        %622 = vmatpush.msra.mxu0 %v609
        %623 = vmatpush.msra.mxu0 %v608
        %624 = vmatpush.msra.mxu0 %v607
        %625 = vmatpush.msra.mxu0 %v606
        %626 = vmatpush.msra.mxu0 %v605
        %627 = vmatpush.msra.mxu0 %v604
        %628 = vmatpush.msra.mxu0 %v603
        %629 = vmatpush.msra.mxu0 %v602
        %630 = vmatpush.msra.mxu0 %v601
        %631 = vmatpush.msra.mxu0 %v600
        %632 = vmatpush.msra.mxu0 %v599
        %633 = vmatpush.msra.mxu0 %v598
        %634 = vmatmul.f32.gmra.mxu0 %v590
        %v635 = vpop.f32.mrf.mxu0
        %v636 = vadd.f32 %v616, %v635
        %637 = vmatmul.f32.gmra.mxu0 %v591
        %v638 = vpop.f32.mrf.mxu0
        %v639 = vadd.f32 %v616, %v638
        %640 = vmatmul.f32.gmra.mxu0 %v592
        %v641 = vpop.f32.mrf.mxu0
        %v642 = vadd.f32 %v616, %v641
        %643 = vmatmul.f32.gmra.mxu0 %v593
        %v644 = vpop.f32.mrf.mxu0
        %v645 = vadd.f32 %v616, %v644
        %646 = vmatmul.f32.gmra.mxu0 %v594
        %v647 = vpop.f32.mrf.mxu0
        %v648 = vadd.f32 %v616, %v647
        %649 = vmatmul.f32.gmra.mxu0 %v595
        %v650 = vpop.f32.mrf.mxu0
        %v651 = vadd.f32 %v616, %v650
        %652 = vmatmul.f32.gmra.mxu0 %v596
        %v653 = vpop.f32.mrf.mxu0
        %v654 = vadd.f32 %v616, %v653
        %655 = vmatmul.f32.gmra.mxu0 %v597
        %v656 = vpop.f32.mrf.mxu0
        %v657 = vadd.f32 %v616, %v656
        %658 = vdwg.mxu0
        %v659 = vtanh.pop %v636
        %v660 = vtanh.pop %v639
        %v661 = vtanh.pop %v642
        %v662 = vtanh.pop %v645
        %v663 = vtanh.pop %v648
        %v664 = vtanh.pop %v651
        %v665 = vtanh.pop %v654
        %v666 = vtanh.pop %v657
        %v667 = vld [vmem:[#allocation5] sm:$0xff]
        %v668 = vld [vmem:[#allocation5 + $0x8] sm:$0xff]
        %v669 = vld [vmem:[#allocation5 + $0x10] sm:$0xff]
        %v670 = vld [vmem:[#allocation5 + $0x18] sm:$0xff]
        %v671 = vld [vmem:[#allocation5 + $0x20] sm:$0xff]
        %v672 = vld [vmem:[#allocation5 + $0x28] sm:$0xff]
        %v673 = vld [vmem:[#allocation5 + $0x30] sm:$0xff]
        %v674 = vld [vmem:[#allocation5 + $0x38] sm:$0xff]
        %v675 = vld [vmem:[#allocation5 + $0x40] sm:$0xff]
        %v676 = vld [vmem:[#allocation5 + $0x48] sm:$0xff]
        %v677 = vld [vmem:[#allocation5 + $0x50] sm:$0xff]
        %v678 = vld [vmem:[#allocation5 + $0x58] sm:$0xff]
        %v679 = vld [vmem:[#allocation5 + $0x60] sm:$0xff]
        %v680 = vld [vmem:[#allocation5 + $0x68] sm:$0xff]
        %v681 = vld [vmem:[#allocation5 + $0x70] sm:$0xff]
        %v682 = vld [vmem:[#allocation5 + $0x78] sm:$0xff]
        %v683 = vld [vmem:[%s8] sm:$0x1]
        %v685 = vperm.slane %v683, 0
        %687 = vmatpush.msra.mxu0 %v682
        %688 = vmatpush.msra.mxu0 %v681
        %689 = vmatpush.msra.mxu0 %v680
        %690 = vmatpush.msra.mxu0 %v679
        %691 = vmatpush.msra.mxu0 %v678
        %692 = vmatpush.msra.mxu0 %v677
        %693 = vmatpush.msra.mxu0 %v676
        %694 = vmatpush.msra.mxu0 %v675
        %695 = vmatpush.msra.mxu0 %v674
        %696 = vmatpush.msra.mxu0 %v673
        %697 = vmatpush.msra.mxu0 %v672
        %698 = vmatpush.msra.mxu0 %v671
        %699 = vmatpush.msra.mxu0 %v670
        %700 = vmatpush.msra.mxu0 %v669
        %701 = vmatpush.msra.mxu0 %v668
        %702 = vmatpush.msra.mxu0 %v667
        %703 = vmatmul.f32.gmra.mxu0 %v659
        %v704 = vpop.f32.mrf.mxu0
        %v705 = vadd.f32 %v685, %v704
        %706 = vmatmul.f32.gmra.mxu0 %v660
        %v707 = vpop.f32.mrf.mxu0
        %v708 = vadd.f32 %v685, %v707
        %709 = vmatmul.f32.gmra.mxu0 %v661
        %v710 = vpop.f32.mrf.mxu0
        %v711 = vadd.f32 %v685, %v710
        %712 = vmatmul.f32.gmra.mxu0 %v662
        %v713 = vpop.f32.mrf.mxu0
        %v714 = vadd.f32 %v685, %v713
        %715 = vmatmul.f32.gmra.mxu0 %v663
        %v716 = vpop.f32.mrf.mxu0
        %v717 = vadd.f32 %v685, %v716
        %718 = vmatmul.f32.gmra.mxu0 %v664
        %v719 = vpop.f32.mrf.mxu0
        %v720 = vadd.f32 %v685, %v719
        %721 = vmatmul.f32.gmra.mxu0 %v665
        %v722 = vpop.f32.mrf.mxu0
        %v723 = vadd.f32 %v685, %v722
        %724 = vmatmul.f32.gmra.mxu0 %v666
        %v725 = vpop.f32.mrf.mxu0
        %v726 = vadd.f32 %v685, %v725
        %727 = vdwg.mxu0
        %v728 = vtanh.pop %v705
        %v729 = vtanh.pop %v708
        %v730 = vtanh.pop %v711
        %v731 = vtanh.pop %v714
        %v732 = vtanh.pop %v717
        %v733 = vtanh.pop %v720
        %v734 = vtanh.pop %v723
        %v735 = vtanh.pop %v726
        %v736 = vld [vmem:[#allocation7] sm:$0xff]
        %v737 = vld [vmem:[#allocation7 + $0x8] sm:$0xff]
        %v738 = vld [vmem:[#allocation7 + $0x10] sm:$0xff]
        %v739 = vld [vmem:[#allocation7 + $0x18] sm:$0xff]
        %v740 = vld [vmem:[#allocation7 + $0x20] sm:$0xff]
        %v741 = vld [vmem:[#allocation7 + $0x28] sm:$0xff]
        %v742 = vld [vmem:[#allocation7 + $0x30] sm:$0xff]
        %v743 = vld [vmem:[#allocation7 + $0x38] sm:$0xff]
        %v744 = vld [vmem:[#allocation7 + $0x40] sm:$0xff]
        %v745 = vld [vmem:[#allocation7 + $0x48] sm:$0xff]
        %v746 = vld [vmem:[#allocation7 + $0x50] sm:$0xff]
        %v747 = vld [vmem:[#allocation7 + $0x58] sm:$0xff]
        %v748 = vld [vmem:[#allocation7 + $0x60] sm:$0xff]
        %v749 = vld [vmem:[#allocation7 + $0x68] sm:$0xff]
        %v750 = vld [vmem:[#allocation7 + $0x70] sm:$0xff]
        %v751 = vld [vmem:[#allocation7 + $0x78] sm:$0xff]
        %v752 = vld [vmem:[%s10] sm:$0x1]
        %v754 = vperm.slane %v752, 0
        %756 = vmatpush.msra.mxu0 %v751
        %757 = vmatpush.msra.mxu0 %v750
        %758 = vmatpush.msra.mxu0 %v749
        %759 = vmatpush.msra.mxu0 %v748
        %760 = vmatpush.msra.mxu0 %v747
        %761 = vmatpush.msra.mxu0 %v746
        %762 = vmatpush.msra.mxu0 %v745
        %763 = vmatpush.msra.mxu0 %v744
        %764 = vmatpush.msra.mxu0 %v743
        %765 = vmatpush.msra.mxu0 %v742
        %766 = vmatpush.msra.mxu0 %v741
        %767 = vmatpush.msra.mxu0 %v740
        %768 = vmatpush.msra.mxu0 %v739
        %769 = vmatpush.msra.mxu0 %v738
        %770 = vmatpush.msra.mxu0 %v737
        %771 = vmatpush.msra.mxu0 %v736
        %772 = vmatmul.f32.gmra.mxu0 %v728
        %v773 = vpop.f32.mrf.mxu0
        %v774 = vadd.f32 %v754, %v773
        %775 = vmatmul.f32.gmra.mxu0 %v729
        %v776 = vpop.f32.mrf.mxu0
        %v777 = vadd.f32 %v754, %v776
        %778 = vmatmul.f32.gmra.mxu0 %v730
        %v779 = vpop.f32.mrf.mxu0
        %v780 = vadd.f32 %v754, %v779
        %781 = vmatmul.f32.gmra.mxu0 %v731
        %v782 = vpop.f32.mrf.mxu0
        %v783 = vadd.f32 %v754, %v782
        %784 = vmatmul.f32.gmra.mxu0 %v732
        %v785 = vpop.f32.mrf.mxu0
        %v786 = vadd.f32 %v754, %v785
        %787 = vmatmul.f32.gmra.mxu0 %v733
        %v788 = vpop.f32.mrf.mxu0
        %v789 = vadd.f32 %v754, %v788
        %790 = vmatmul.f32.gmra.mxu0 %v734
        %v791 = vpop.f32.mrf.mxu0
        %v792 = vadd.f32 %v754, %v791
        %793 = vmatmul.f32.gmra.mxu0 %v735
        %v794 = vpop.f32.mrf.mxu0
        %v795 = vadd.f32 %v754, %v794
        %796 = vdwg.mxu0
        %v797 = vtanh.pop %v774
        %v798 = vtanh.pop %v777
        %v799 = vtanh.pop %v780
        %v800 = vtanh.pop %v783
        %v801 = vtanh.pop %v786
        %v802 = vtanh.pop %v789
        %v803 = vtanh.pop %v792
        %v804 = vtanh.pop %v795
        %805 = vst [vmem:[%s430] sm:$0xff] %v797
        %806 = vst [vmem:[%s430 + $0x8] sm:$0xff] %v798
        %807 = vst [vmem:[%s430 + $0x10] sm:$0xff] %v799
        %808 = vst [vmem:[%s430 + $0x18] sm:$0xff] %v800
        %809 = vst [vmem:[%s430 + $0x20] sm:$0xff] %v801
        %810 = vst [vmem:[%s430 + $0x28] sm:$0xff] %v802
        %811 = vst [vmem:[%s430 + $0x30] sm:$0xff] %v803
        %812 = vst [vmem:[%s430 + $0x38] sm:$0xff] %v804
        %s813 = sand.u32 %s271, 1
        %s814 = scalar_lea.sflag [#allocation4], %s813
        %s815 = sand.u32 %s271, 1
        %s816 = smul.addr %s815, 64
        %s817 = scalar_lea.vmem [#allocation8], %s816
        // Predicated region
        $region77: #{tpu_custom_call.1} parent=63 // pred_check
          %p818 = pneg %p281
        $region78: #{tpu_custom_call.1} parent=63 // pred_check_branch
          %820 = sbr.rel (%p818) target = $region80
        $region79: #{tpu_custom_call.1} parent=63 // pred_region
          %s821 = smul.u32 8, %s27
          %823 = vsyncadd %s814, 0
          %s824 = smul.addr %s821, 8
          %s825 = scalar_lea.hbm %s11, %s824
          %s826 = sshll.u32 %s817, 4
          %s827 = int_to_ptr.vmem [resolvable:$true] %s826
          %s828 = sshll.u32 %s825, 4
          %s829 = int_to_ptr.hbm [resolvable:$true] %s828
          %834 = dma.vmem_to_hbm [thread:$0]  %s827, 1024, %s829, %s814, 128, 128, 8
        $region80: #{tpu_custom_call.1} parent=63 // pred_fallthru
          _
      $region64: #{tpu_custom_call.1} parent=5 // pred_fallthru
        _
      %p835 = scmp.le.s32.totalorder 2, %s22
      // Predicated region
      $region81: #{tpu_custom_call.1} parent=5 // pred_check
        %p836 = pneg %p835
      $region82: #{tpu_custom_call.1} parent=5 // pred_check_branch
        %838 = sbr.rel (%p836) target = $region84
      $region83: #{tpu_custom_call.1} parent=5 // pred_region
        %s839 = ssub.s32 %s22, 2
        // Predicated region
        $region85: #{tpu_custom_call.1} parent=83 // pred_check
          %p840 = pneg %p287
        $region86: #{tpu_custom_call.1} parent=83 // pred_check_branch
          %842 = sbr.rel (%p840) target = $region88
        $region87: #{tpu_custom_call.1} parent=83 // pred_region
          %s843 = sand.u32 %s272, 1
          %s844 = scalar_lea.sflag [#allocation4], %s843
          %s845 = sand.u32 %s272, 1
          %s846 = smul.addr %s845, 64
          %s847 = scalar_lea.vmem [#allocation8], %s846
          %849 = dma.done %s844, 1024
        $region88: #{tpu_custom_call.1} parent=83 // pred_fallthru
          _
      $region84: #{tpu_custom_call.1} parent=5 // pred_fallthru
        _
    $region6: #{tpu_custom_call.1} parent=1 // loop_footer
      %s26 = sadd.s32 1, %s22
    $region7: #{tpu_custom_call.1} parent=1 // loop_footer_branch
      %21 = sbr.rel target = $region3
    $region8: #{tpu_custom_call.1} parent=1 // loop_exit
      _
    %850 = vsyncpa [#allocation3], 1
    %s851 = scalar_lea.sflag [#allocation3], 1
    %852 = vsyncpa %s851, 1
    %853 = vsyncpa [#allocation6], 1
    %854 = vsyncpa [#allocation4], 1
    %s855 = scalar_lea.sflag [#allocation4], 1
    %856 = vsyncpa %s855, 1

// kernel: tpu_custom_call.1
$region0: #{tpu_custom_call.1}
  #allocation0 [shape = 'u32[]', space=smem, size = 0x4, offset = 0x4, fixed_abs, tag = 'smem constant byte address 0x4 - core index']
  #allocation1 [shape = 'u32[72,128]{1,0:T(1,128)}', space=vmem, size = 0x9000, scoped, tag = 'internal scratch']
  %s0 = inlined_call_operand.vmem [shape: f32[128,3], index: 0, kind: input, shape index: {}]
  %s1 = inlined_call_operand.vmem [shape: f32[3,128], index: 1, kind: input, shape index: {}]
  %s2 = inlined_call_operand.vmem [shape: f32[1,128], index: 2, kind: input, shape index: {}]
  %s3 = inlined_call_operand.vmem [shape: f32[128,128], index: 3, kind: input, shape index: {}]
  %s4 = inlined_call_operand.vmem [shape: f32[1,128], index: 4, kind: input, shape index: {}]
  %s5 = inlined_call_operand.hbm [shape: f32[128,128], index: 5, kind: input, shape index: {}]
  %s6 = inlined_call_operand.vmem [shape: f32[1,128], index: 6, kind: input, shape index: {}]
  %s7 = inlined_call_operand.hbm [shape: f32[128,128], index: 7, kind: input, shape index: {}]
  %s8 = inlined_call_operand.vmem [shape: f32[1,128], index: 8, kind: input, shape index: {}]
  %s9 = inlined_call_operand.hbm [shape: f32[128,128], index: 9, kind: input, shape index: {}]
  %s10 = inlined_call_operand.vmem [shape: f32[1,128], index: 10, kind: input, shape index: {}]
  %s11 = inlined_call_operand.hbm [shape: f32[128,128], index: 11, kind: output, shape index: {}]
  %s12 = sld [smem:[#allocation0]]
  $region89: #{tpu_custom_call.1} parent=0
    _
  %s14 = ssub.s32 1, %s12
  %s15 = scalar_select 0, %s14, %s12
  $region1: #{tpu_custom_call.1} parent=0
    #allocation2 [shape = 'u8[65536]{0}', space=vmem, size = 0x10000, scoped, tag = 'input window, operand 5, single buffered']
    #allocation3 [shape = 's32[2]{0}', space=sflag, size = 0x8, scoped, tag = 'scoped memory for tpu_custom_call.1']
    #allocation4 [shape = 's32[2]{0}', space=sflag, size = 0x8, scoped, tag = 'scoped memory for tpu_custom_call.1']
    #allocation5 [shape = 'u8[65536]{0}', space=vmem, size = 0x10000, scoped, tag = 'input window, operand 7, single buffered']
    #allocation6 [shape = 's32[1]{0}', space=sflag, size = 0x4, scoped, tag = 'scoped memory for tpu_custom_call.1']
    #allocation7 [shape = 'u8[65536]{0}', space=vmem, size = 0x10000, scoped, tag = 'input window, operand 9, single buffered']
    #allocation8 [shape = 'u8[65536]{0}', space=vmem, size = 0x10000, scoped, tag = 'output window, operand 0']
    %16 = vsyncpa [#allocation3], 0
    %17 = vsyncpa [#allocation6], 0
    %18 = vsyncpa [#allocation4], 0
    %s19 = scalar_lea.sflag [#allocation4], 1
    %20 = vsyncpa %s19, 0
    loop: start=0, step=1, limit=4
    $region2: #{tpu_custom_call.1} parent=1 // loop_pre_header
      _
    $region3: #{tpu_custom_call.1} parent=1 // loop_header
      %s22 = sphi 0, %s26
      %p23 = scmp.ge.s32.totalorder %s22, 4
      %s32 = sphi 0, %s34
      %s35 = sphi 0, %s32
      %s36 = sphi 0, %s35
      %s52 = sphi 0, %s36
      %s56 = sphi 0, %s56
      %s58 = sphi 0, %s56
      %s59 = sphi 0, %s58
      %s73 = sphi 0, %s59
      %s77 = sphi 0, %s77
      %s79 = sphi 0, %s77
      %s80 = sphi 0, %s79
      %s94 = sphi 0, %s80
      %s98 = sphi 0, %s98
      %s100 = sphi 0, %s98
      %s101 = sphi 0, %s100
      %s115 = sphi 0, %s101
      %s119 = sphi 0, %s119
      %s121 = sphi 0, %s119
      %s122 = sphi 0, %s121
      %s136 = sphi 0, %s122
      %s140 = sphi 0, %s140
      %s142 = sphi 0, %s140
      %s143 = sphi 0, %s142
      %s157 = sphi 0, %s143
      %s161 = sphi 0, %s161
      %s163 = sphi 0, %s161
      %s164 = sphi 0, %s163
      %s178 = sphi 0, %s164
      %s182 = sphi 0, %s182
      %s184 = sphi 0, %s182
      %s185 = sphi 0, %s184
      %s199 = sphi 0, %s185
      %s203 = sphi 0, %s203
      %s205 = sphi 0, %s203
      %s206 = sphi 0, %s205
      %s220 = sphi 0, %s206
      %s224 = sphi 0, %s224
      %s226 = sphi 0, %s224
      %s227 = sphi 0, %s226
      %s241 = sphi 0, %s227
      %s245 = sphi 0, %s245
      %s247 = sphi 0, %s245
      %s248 = sphi 0, %s247
      %s262 = sphi 0, %s248
      %s268 = sphi 0, %s270
      %s271 = sphi 0, %s268
      %s272 = sphi 0, %s271
      %s288 = sphi 0, %s272
    $region4: #{tpu_custom_call.1} parent=1 // loop_header_branch
      %25 = sbr.rel (%p23) target = $region8
    $region5: #{tpu_custom_call.1} parent=1 // loop_body
      %s27 = ssub.s32 %s22, 1
      %s28 = ssub.s32 %s22, 2
      %s29 = sadd.s32 %s22, 1
      %s30 = ssub.s32 %s22, %s29
      %p31 = scmp.eq.s32.totalorder %s30, 0
      %s33 = sadd.s32 %s32, 1
      %s34 = scalar_select %p31, %s32, %s33
      %p37 = pneg %p31
      %p38 = scmp.eq.s32.totalorder %s22, 1
      %p39 = por %p37, %p38
      %p40 = scmp.ne.s32.totalorder %s32, %s35
      %p41 = scmp.eq.s32.totalorder %s22, 0
      %p42 = por %p40, %p41
      %p43 = scmp.ne.s32.totalorder %s32, %s35
      %p44 = scmp.eq.s32.totalorder %s27, 1
      %p45 = por %p43, %p44
      %p46 = scmp.ne.s32.totalorder %s35, %s36
      %p47 = scmp.eq.s32.totalorder %s27, 0
      %p48 = por %p46, %p47
      %p49 = scmp.ne.s32.totalorder %s35, %s36
      %p50 = scmp.eq.s32.totalorder %s28, 1
      %p51 = por %p49, %p50
      %p53 = scmp.ne.s32.totalorder %s36, %s52
      %p54 = scmp.eq.s32.totalorder %s28, 0
      %p55 = por %p53, %p54
      %s57 = sadd.s32 %s56, 1
      %p60 = scmp.eq.s32.totalorder %s22, 1
      %p61 = scmp.ne.s32.totalorder %s56, %s58
      %p62 = scmp.eq.s32.totalorder %s22, 0
      %p63 = por %p61, %p62
      %p64 = scmp.ne.s32.totalorder %s56, %s58
      %p65 = scmp.eq.s32.totalorder %s27, 1
      %p66 = por %p64, %p65
      %p67 = scmp.ne.s32.totalorder %s58, %s59
      %p68 = scmp.eq.s32.totalorder %s27, 0
      %p69 = por %p67, %p68
      %p70 = scmp.ne.s32.totalorder %s58, %s59
      %p71 = scmp.eq.s32.totalorder %s28, 1
      %p72 = por %p70, %p71
      %p74 = scmp.ne.s32.totalorder %s59, %s73
      %p75 = scmp.eq.s32.totalorder %s28, 0
      %p76 = por %p74, %p75
      %s78 = sadd.s32 %s77, 1
      %p81 = scmp.eq.s32.totalorder %s22, 1
      %p82 = scmp.ne.s32.totalorder %s77, %s79
      %p83 = scmp.eq.s32.totalorder %s22, 0
      %p84 = por %p82, %p83
      %p85 = scmp.ne.s32.totalorder %s77, %s79
      %p86 = scmp.eq.s32.totalorder %s27, 1
      %p87 = por %p85, %p86
      %p88 = scmp.ne.s32.totalorder %s79, %s80
      %p89 = scmp.eq.s32.totalorder %s27, 0
      %p90 = por %p88, %p89
      %p91 = scmp.ne.s32.totalorder %s79, %s80
      %p92 = scmp.eq.s32.totalorder %s28, 1
      %p93 = por %p91, %p92
      %p95 = scmp.ne.s32.totalorder %s80, %s94
      %p96 = scmp.eq.s32.totalorder %s28, 0
      %p97 = por %p95, %p96
      %s99 = sadd.s32 %s98, 1
      %p102 = scmp.eq.s32.totalorder %s22, 1
      %p103 = scmp.ne.s32.totalorder %s98, %s100
      %p104 = scmp.eq.s32.totalorder %s22, 0
      %p105 = por %p103, %p104
      %p106 = scmp.ne.s32.totalorder %s98, %s100
      %p107 = scmp.eq.s32.totalorder %s27, 1
      %p108 = por %p106, %p107
      %p109 = scmp.ne.s32.totalorder %s100, %s101
      %p110 = scmp.eq.s32.totalorder %s27, 0
      %p111 = por %p109, %p110
      %p112 = scmp.ne.s32.totalorder %s100, %s101
      %p113 = scmp.eq.s32.totalorder %s28, 1
      %p114 = por %p112, %p113
      %p116 = scmp.ne.s32.totalorder %s101, %s115
      %p117 = scmp.eq.s32.totalorder %s28, 0
      %p118 = por %p116, %p117
      %s120 = sadd.s32 %s119, 1
      %p123 = scmp.eq.s32.totalorder %s22, 1
      %p124 = scmp.ne.s32.totalorder %s119, %s121
      %p125 = scmp.eq.s32.totalorder %s22, 0
      %p126 = por %p124, %p125
      %p127 = scmp.ne.s32.totalorder %s119, %s121
      %p128 = scmp.eq.s32.totalorder %s27, 1
      %p129 = por %p127, %p128
      %p130 = scmp.ne.s32.totalorder %s121, %s122
      %p131 = scmp.eq.s32.totalorder %s27, 0
      %p132 = por %p130, %p131
      %p133 = scmp.ne.s32.totalorder %s121, %s122
      %p134 = scmp.eq.s32.totalorder %s28, 1
      %p135 = por %p133, %p134
      %p137 = scmp.ne.s32.totalorder %s122, %s136
      %p138 = scmp.eq.s32.totalorder %s28, 0
      %p139 = por %p137, %p138
      %s141 = sadd.s32 %s140, 1
      %p144 = scmp.eq.s32.totalorder %s22, 1
      %p145 = scmp.ne.s32.totalorder %s140, %s142
      %p146 = scmp.eq.s32.totalorder %s22, 0
      %p147 = por %p145, %p146
      %p148 = scmp.ne.s32.totalorder %s140, %s142
      %p149 = scmp.eq.s32.totalorder %s27, 1
      %p150 = por %p148, %p149
      %p151 = scmp.ne.s32.totalorder %s142, %s143
      %p152 = scmp.eq.s32.totalorder %s27, 0
      %p153 = por %p151, %p152
      %p154 = scmp.ne.s32.totalorder %s142, %s143
      %p155 = scmp.eq.s32.totalorder %s28, 1
      %p156 = por %p154, %p155
      %p158 = scmp.ne.s32.totalorder %s143, %s157
      %p159 = scmp.eq.s32.totalorder %s28, 0
      %p160 = por %p158, %p159
      %s162 = sadd.s32 %s161, 1
      %p165 = scmp.eq.s32.totalorder %s22, 1
      %p166 = scmp.ne.s32.totalorder %s161, %s163
      %p167 = scmp.eq.s32.totalorder %s22, 0
      %p168 = por %p166, %p167
      %p169 = scmp.ne.s32.totalorder %s161, %s163
      %p170 = scmp.eq.s32.totalorder %s27, 1
      %p171 = por %p169, %p170
      %p172 = scmp.ne.s32.totalorder %s163, %s164
      %p173 = scmp.eq.s32.totalorder %s27, 0
      %p174 = por %p172, %p173
      %p175 = scmp.ne.s32.totalorder %s163, %s164
      %p176 = scmp.eq.s32.totalorder %s28, 1
      %p177 = por %p175, %p176
      %p179 = scmp.ne.s32.totalorder %s164, %s178
      %p180 = scmp.eq.s32.totalorder %s28, 0
      %p181 = por %p179, %p180
      %s183 = sadd.s32 %s182, 1
      %p186 = scmp.eq.s32.totalorder %s22, 1
      %p187 = scmp.ne.s32.totalorder %s182, %s184
      %p188 = scmp.eq.s32.totalorder %s22, 0
      %p189 = por %p187, %p188
      %p190 = scmp.ne.s32.totalorder %s182, %s184
      %p191 = scmp.eq.s32.totalorder %s27, 1
      %p192 = por %p190, %p191
      %p193 = scmp.ne.s32.totalorder %s184, %s185
      %p194 = scmp.eq.s32.totalorder %s27, 0
      %p195 = por %p193, %p194
      %p196 = scmp.ne.s32.totalorder %s184, %s185
      %p197 = scmp.eq.s32.totalorder %s28, 1
      %p198 = por %p196, %p197
      %p200 = scmp.ne.s32.totalorder %s185, %s199
      %p201 = scmp.eq.s32.totalorder %s28, 0
      %p202 = por %p200, %p201
      %s204 = sadd.s32 %s203, 1
      %p207 = scmp.eq.s32.totalorder %s22, 1
      %p208 = scmp.ne.s32.totalorder %s203, %s205
      %p209 = scmp.eq.s32.totalorder %s22, 0
      %p210 = por %p208, %p209
      %p211 = scmp.ne.s32.totalorder %s203, %s205
      %p212 = scmp.eq.s32.totalorder %s27, 1
      %p213 = por %p211, %p212
      %p214 = scmp.ne.s32.totalorder %s205, %s206
      %p215 = scmp.eq.s32.totalorder %s27, 0
      %p216 = por %p214, %p215
      %p217 = scmp.ne.s32.totalorder %s205, %s206
      %p218 = scmp.eq.s32.totalorder %s28, 1
      %p219 = por %p217, %p218
      %p221 = scmp.ne.s32.totalorder %s206, %s220
      %p222 = scmp.eq.s32.totalorder %s28, 0
      %p223 = por %p221, %p222
      %s225 = sadd.s32 %s224, 1
      %p228 = scmp.eq.s32.totalorder %s22, 1
      %p229 = scmp.ne.s32.totalorder %s224, %s226
      %p230 = scmp.eq.s32.totalorder %s22, 0
      %p231 = por %p229, %p230
      %p232 = scmp.ne.s32.totalorder %s224, %s226
      %p233 = scmp.eq.s32.totalorder %s27, 1
      %p234 = por %p232, %p233
      %p235 = scmp.ne.s32.totalorder %s226, %s227
      %p236 = scmp.eq.s32.totalorder %s27, 0
      %p237 = por %p235, %p236
      %p238 = scmp.ne.s32.totalorder %s226, %s227
      %p239 = scmp.eq.s32.totalorder %s28, 1
      %p240 = por %p238, %p239
      %p242 = scmp.ne.s32.totalorder %s227, %s241
      %p243 = scmp.eq.s32.totalorder %s28, 0
      %p244 = por %p242, %p243
      %s246 = sadd.s32 %s245, 1
      %p249 = scmp.eq.s32.totalorder %s22, 1
      %p250 = scmp.ne.s32.totalorder %s245, %s247
      %p251 = scmp.eq.s32.totalorder %s22, 0
      %p252 = por %p250, %p251
      %p253 = scmp.ne.s32.totalorder %s245, %s247
      %p254 = scmp.eq.s32.totalorder %s27, 1
      %p255 = por %p253, %p254
      %p256 = scmp.ne.s32.totalorder %s247, %s248
      %p257 = scmp.eq.s32.totalorder %s27, 0
      %p258 = por %p256, %p257
      %p259 = scmp.ne.s32.totalorder %s247, %s248
      %p260 = scmp.eq.s32.totalorder %s28, 1
      %p261 = por %p259, %p260
      %p263 = scmp.ne.s32.totalorder %s248, %s262
      %p264 = scmp.eq.s32.totalorder %s28, 0
      %p265 = por %p263, %p264
      %s266 = ssub.s32 %s22, %s29
      %p267 = scmp.eq.s32.totalorder %s266, 0
      %s269 = sadd.s32 %s268, 1
      %s270 = scalar_select %p267, %s268, %s269
      %p273 = pneg %p267
      %p274 = scmp.eq.s32.totalorder %s22, 1
      %p275 = por %p273, %p274
      %p276 = scmp.ne.s32.totalorder %s268, %s271
      %p277 = scmp.eq.s32.totalorder %s22, 0
      %p278 = por %p276, %p277
      %p279 = scmp.ne.s32.totalorder %s268, %s271
      %p280 = scmp.eq.s32.totalorder %s27, 1
      %p281 = por %p279, %p280
      %p282 = scmp.ne.s32.totalorder %s271, %s272
      %p283 = scmp.eq.s32.totalorder %s27, 0
      %p284 = por %p282, %p283
      %p285 = scmp.ne.s32.totalorder %s271, %s272
      %p286 = scmp.eq.s32.totalorder %s28, 1
      %p287 = por %p285, %p286
      %p289 = scmp.ne.s32.totalorder %s272, %s288
      %p290 = scmp.eq.s32.totalorder %s28, 0
      %p291 = por %p289, %p290
      %p292 = scmp.le.s32.totalorder 1, %s22
      %p293 = scmp.lt.s32.totalorder %s22, 3
      %p294 = pnand %p292, %p293
      %p295 = pneg %p294
      // Predicated region
      $region9: #{tpu_custom_call.1} parent=5 // pred_check
        _
      $region10: #{tpu_custom_call.1} parent=5 // pred_check_branch
        %297 = sbr.rel (%p294) target = $region12
      $region11: #{tpu_custom_call.1} parent=5 // pred_region
        %s298 = ssub.s32 %s22, 1
        // Predicated region
        $region13: #{tpu_custom_call.1} parent=11 // pred_check
          %p299 = pneg %p69
        $region14: #{tpu_custom_call.1} parent=11 // pred_check_branch
          %301 = sbr.rel (%p299) target = $region16
        $region15: #{tpu_custom_call.1} parent=11 // pred_region
          _
        $region16: #{tpu_custom_call.1} parent=11 // pred_fallthru
          _
        // Predicated region
        $region17: #{tpu_custom_call.1} parent=11 // pred_check
          %p302 = pneg %p90
        $region18: #{tpu_custom_call.1} parent=11 // pred_check_branch
          %304 = sbr.rel (%p302) target = $region20
        $region19: #{tpu_custom_call.1} parent=11 // pred_region
          _
        $region20: #{tpu_custom_call.1} parent=11 // pred_fallthru
          _
        // Predicated region
        $region21: #{tpu_custom_call.1} parent=11 // pred_check
          %p305 = pneg %p111
        $region22: #{tpu_custom_call.1} parent=11 // pred_check_branch
          %307 = sbr.rel (%p305) target = $region24
        $region23: #{tpu_custom_call.1} parent=11 // pred_region
          _
        $region24: #{tpu_custom_call.1} parent=11 // pred_fallthru
          _
        // Predicated region
        $region25: #{tpu_custom_call.1} parent=11 // pred_check
          %p308 = pneg %p132
        $region26: #{tpu_custom_call.1} parent=11 // pred_check_branch
          %310 = sbr.rel (%p308) target = $region28
        $region27: #{tpu_custom_call.1} parent=11 // pred_region
          _
        $region28: #{tpu_custom_call.1} parent=11 // pred_fallthru
          _
        // Predicated region
        $region29: #{tpu_custom_call.1} parent=11 // pred_check
          %p311 = pneg %p153
        $region30: #{tpu_custom_call.1} parent=11 // pred_check_branch
          %313 = sbr.rel (%p311) target = $region32
        $region31: #{tpu_custom_call.1} parent=11 // pred_region
          %315 = vsyncadd [#allocation3], 0
          %s316 = sshll.u32 %s5, 4
          %s317 = int_to_ptr.hbm [resolvable:$true] %s316
          %s318 = sshll.u32 [#allocation2], 4
          %s319 = int_to_ptr.vmem [resolvable:$true] %s318
          %324 = dma.hbm_to_vmem [thread:$0]  %s317, 2048, %s319, [#allocation3], 128, 128, 8
        $region32: #{tpu_custom_call.1} parent=11 // pred_fallthru
          _
        // Predicated region
        $region33: #{tpu_custom_call.1} parent=11 // pred_check
          %p325 = pneg %p174
        $region34: #{tpu_custom_call.1} parent=11 // pred_check_branch
          %327 = sbr.rel (%p325) target = $region36
        $region35: #{tpu_custom_call.1} parent=11 // pred_region
          _
        $region36: #{tpu_custom_call.1} parent=11 // pred_fallthru
          _
        // Predicated region
        $region37: #{tpu_custom_call.1} parent=11 // pred_check
          %p328 = pneg %p195
        $region38: #{tpu_custom_call.1} parent=11 // pred_check_branch
          %330 = sbr.rel (%p328) target = $region40
        $region39: #{tpu_custom_call.1} parent=11 // pred_region
          %332 = vsyncadd [#allocation6], 0
          %s333 = sshll.u32 %s7, 4
          %s334 = int_to_ptr.hbm [resolvable:$true] %s333
          %s335 = sshll.u32 [#allocation5], 4
          %s336 = int_to_ptr.vmem [resolvable:$true] %s335
          %341 = dma.hbm_to_vmem [thread:$0]  %s334, 2048, %s336, [#allocation6], 128, 128, 8
        $region40: #{tpu_custom_call.1} parent=11 // pred_fallthru
          _
        // Predicated region
        $region41: #{tpu_custom_call.1} parent=11 // pred_check
          %p342 = pneg %p216
        $region42: #{tpu_custom_call.1} parent=11 // pred_check_branch
          %344 = sbr.rel (%p342) target = $region44
        $region43: #{tpu_custom_call.1} parent=11 // pred_region
          _
        $region44: #{tpu_custom_call.1} parent=11 // pred_fallthru
          _
        // Predicated region
        $region45: #{tpu_custom_call.1} parent=11 // pred_check
          %p345 = pneg %p237
        $region46: #{tpu_custom_call.1} parent=11 // pred_check_branch
          %347 = sbr.rel (%p345) target = $region48
        $region47: #{tpu_custom_call.1} parent=11 // pred_region
          %349 = vsyncadd [#allocation6], 0
          %s350 = sshll.u32 %s9, 4
          %s351 = int_to_ptr.hbm [resolvable:$true] %s350
          %s352 = sshll.u32 [#allocation7], 4
          %s353 = int_to_ptr.vmem [resolvable:$true] %s352
          %358 = dma.hbm_to_vmem [thread:$0]  %s351, 2048, %s353, [#allocation6], 128, 128, 8
        $region48: #{tpu_custom_call.1} parent=11 // pred_fallthru
          _
        // Predicated region
        $region49: #{tpu_custom_call.1} parent=11 // pred_check
          %p359 = pneg %p258
        $region50: #{tpu_custom_call.1} parent=11 // pred_check_branch
          %361 = sbr.rel (%p359) target = $region52
        $region51: #{tpu_custom_call.1} parent=11 // pred_region
          _
        $region52: #{tpu_custom_call.1} parent=11 // pred_fallthru
          _
      $region12: #{tpu_custom_call.1} parent=5 // pred_fallthru
        _
      %p362 = scmp.lt.s32.totalorder %s22, 2
      // Predicated region
      $region53: #{tpu_custom_call.1} parent=5 // pred_check
        %p363 = pneg %p362
      $region54: #{tpu_custom_call.1} parent=5 // pred_check_branch
        %365 = sbr.rel (%p363) target = $region56
      $region55: #{tpu_custom_call.1} parent=5 // pred_region
        // Predicated region
        $region57: #{tpu_custom_call.1} parent=55 // pred_check
          %p366 = pneg %p42
        $region58: #{tpu_custom_call.1} parent=55 // pred_check_branch
          %368 = sbr.rel (%p366) target = $region60
        $region59: #{tpu_custom_call.1} parent=55 // pred_region
          %s369 = smul.u32 8, %s22
          %p370 = scmp.lt.s32.totalorder %s369, 15
          %s371 = scalar_select %p370, %s369, 15
          %s372 = smul.addr %s371, 8
          %s373 = scalar_lea.vmem %s0, %s372
          %s374 = smul.u32 8, %s22
        $region60: #{tpu_custom_call.1} parent=55 // pred_fallthru
          _
      $region56: #{tpu_custom_call.1} parent=5 // pred_fallthru
        _
      %p375 = scmp.le.s32.totalorder 1, %s22
      %p376 = scmp.lt.s32.totalorder %s22, 3
      %p377 = pnand %p375, %p376
      %p378 = pneg %p377
      // Predicated region
      $region61: #{tpu_custom_call.1} parent=5 // pred_check
        _
      $region62: #{tpu_custom_call.1} parent=5 // pred_check_branch
        %380 = sbr.rel (%p377) target = $region64
      $region63: #{tpu_custom_call.1} parent=5 // pred_region
        %s381 = ssub.s32 %s22, 1
        // Predicated region
        $region65: #{tpu_custom_call.1} parent=63 // pred_check
          %p382 = pneg %p153
        $region66: #{tpu_custom_call.1} parent=63 // pred_check_branch
          %384 = sbr.rel (%p382) target = $region68
        $region67: #{tpu_custom_call.1} parent=63 // pred_region
          %386 = dma.done [#allocation3], 2048
        $region68: #{tpu_custom_call.1} parent=63 // pred_fallthru
          _
        // Predicated region
        $region69: #{tpu_custom_call.1} parent=63 // pred_check
          %p387 = pneg %p195
        $region70: #{tpu_custom_call.1} parent=63 // pred_check_branch
          %389 = sbr.rel (%p387) target = $region72
        $region71: #{tpu_custom_call.1} parent=63 // pred_region
          %391 = dma.done [#allocation6], 2048
        $region72: #{tpu_custom_call.1} parent=63 // pred_fallthru
          _
        // Predicated region
        $region73: #{tpu_custom_call.1} parent=63 // pred_check
          %p392 = pneg %p237
        $region74: #{tpu_custom_call.1} parent=63 // pred_check_branch
          %394 = sbr.rel (%p392) target = $region76
        $region75: #{tpu_custom_call.1} parent=63 // pred_region
          %396 = dma.done [#allocation6], 2048
        $region76: #{tpu_custom_call.1} parent=63 // pred_fallthru
          _
        %s397 = smul.u32 8, %s27
        %p398 = scmp.lt.s32.totalorder %s397, 15
        %s399 = scalar_select %p398, %s397, 15
        %s400 = smul.addr %s399, 8
        %s401 = scalar_lea.vmem %s0, %s400
        %p402 = pneg %p48
        %p403 = pneg %p45
        %p404 = pneg %p69
        %p405 = pneg %p66
        %p406 = pneg %p90
        %p407 = pneg %p87
        %p408 = pneg %p111
        %p409 = pneg %p108
        %p410 = pneg %p132
        %p411 = pneg %p129
        %p412 = pneg %p153
        %p413 = pneg %p150
        %p414 = pneg %p174
        %p415 = pneg %p171
        %p416 = pneg %p195
        %p417 = pneg %p192
        %p418 = pneg %p216
        %p419 = pneg %p213
        %p420 = pneg %p237
        %p421 = pneg %p234
        %p422 = pneg %p258
        %p423 = pneg %p255
        %p424 = pneg %p284
        %p425 = pneg %p281
        %s426 = sand.u32 %s271, 1
        %s427 = scalar_lea.sflag [#allocation4], %s426
        %s428 = sand.u32 %s271, 1
        %s429 = smul.addr %s428, 64
        %s430 = scalar_lea.vmem [#allocation8], %s429
        %s431 = smul.u32 8, %s27
        %p432 = scmp.lt.s32.totalorder %s431, 15
        %s433 = scalar_select %p432, %s431, 15
        %s434 = smul.addr %s433, 8
        %s435 = scalar_lea.vmem %s0, %s434
        %s436 = smul.u32 8, %s27
        %s437 = smul.u32 8, %s27
        %v438 = vld [vmem:[%s435] sm:$0xff]
        %v439 = vld [vmem:[%s435 + $0x8] sm:$0xff]
        %v440 = vld [vmem:[%s435 + $0x10] sm:$0xff]
        %v441 = vld [vmem:[%s435 + $0x18] sm:$0xff]
        %v442 = vld [vmem:[%s435 + $0x20] sm:$0xff]
        %v443 = vld [vmem:[%s435 + $0x28] sm:$0xff]
        %v444 = vld [vmem:[%s435 + $0x30] sm:$0xff]
        %v445 = vld [vmem:[%s435 + $0x38] sm:$0xff]
        %v446 = vld [vmem:[%s1] sm:$0x7]
        %v447 = vld [vmem:[%s2] sm:$0x1]
        %v449 = vperm.slane %v447, 0
        %vm451 = vcmask 23552
        %v453 = vsel %vm451, %v438, 0
        %v456 = vsel %vm451, %v439, 0
        %v459 = vsel %vm451, %v440, 0
        %v462 = vsel %vm451, %v441, 0
        %v465 = vsel %vm451, %v442, 0
        %v468 = vsel %vm451, %v443, 0
        %v471 = vsel %vm451, %v444, 0
        %v474 = vsel %vm451, %v445, 0
        %vm476 = vcmask 1042432
        %v478 = vsel %vm476, %v446, 0
        %480 = vmatpush.msra.mxu0 0.0
        %481 = vmatpush.msra.mxu0 0.0
        %482 = vmatpush.msra.mxu0 0.0
        %483 = vmatpush.msra.mxu0 0.0
        %484 = vmatpush.msra.mxu0 0.0
        %485 = vmatpush.msra.mxu0 0.0
        %486 = vmatpush.msra.mxu0 0.0
        %487 = vmatpush.msra.mxu0 0.0
        %488 = vmatpush.msra.mxu0 0.0
        %489 = vmatpush.msra.mxu0 0.0
        %490 = vmatpush.msra.mxu0 0.0
        %491 = vmatpush.msra.mxu0 0.0
        %492 = vmatpush.msra.mxu0 0.0
        %493 = vmatpush.msra.mxu0 0.0
        %494 = vmatpush.msra.mxu0 0.0
        %495 = vmatpush.msra.mxu0 %v478
        %496 = vmatmul.f32.gmra.mxu0 %v453
        %v497 = vpop.f32.mrf.mxu0
        %v498 = vadd.f32 %v449, %v497
        %499 = vmatmul.f32.gmra.mxu0 %v456
        %v500 = vpop.f32.mrf.mxu0
        %v501 = vadd.f32 %v449, %v500
        %502 = vmatmul.f32.gmra.mxu0 %v459
        %v503 = vpop.f32.mrf.mxu0
        %v504 = vadd.f32 %v449, %v503
        %505 = vmatmul.f32.gmra.mxu0 %v462
        %v506 = vpop.f32.mrf.mxu0
        %v507 = vadd.f32 %v449, %v506
        %508 = vmatmul.f32.gmra.mxu0 %v465
        %v509 = vpop.f32.mrf.mxu0
        %v510 = vadd.f32 %v449, %v509
        %511 = vmatmul.f32.gmra.mxu0 %v468
        %v512 = vpop.f32.mrf.mxu0
        %v513 = vadd.f32 %v449, %v512
        %514 = vmatmul.f32.gmra.mxu0 %v471
        %v515 = vpop.f32.mrf.mxu0
        %v516 = vadd.f32 %v449, %v515
        %517 = vmatmul.f32.gmra.mxu0 %v474
        %v518 = vpop.f32.mrf.mxu0
        %v519 = vadd.f32 %v449, %v518
        %520 = vdwg.mxu0
        %v521 = vtanh.pop %v498
        %v522 = vtanh.pop %v501
        %v523 = vtanh.pop %v504
        %v524 = vtanh.pop %v507
        %v525 = vtanh.pop %v510
        %v526 = vtanh.pop %v513
        %v527 = vtanh.pop %v516
        %v528 = vtanh.pop %v519
        %v529 = vld [vmem:[%s3] sm:$0xff]
        %v530 = vld [vmem:[%s3 + $0x8] sm:$0xff]
        %v531 = vld [vmem:[%s3 + $0x10] sm:$0xff]
        %v532 = vld [vmem:[%s3 + $0x18] sm:$0xff]
        %v533 = vld [vmem:[%s3 + $0x20] sm:$0xff]
        %v534 = vld [vmem:[%s3 + $0x28] sm:$0xff]
        %v535 = vld [vmem:[%s3 + $0x30] sm:$0xff]
        %v536 = vld [vmem:[%s3 + $0x38] sm:$0xff]
        %v537 = vld [vmem:[%s3 + $0x40] sm:$0xff]
        %v538 = vld [vmem:[%s3 + $0x48] sm:$0xff]
        %v539 = vld [vmem:[%s3 + $0x50] sm:$0xff]
        %v540 = vld [vmem:[%s3 + $0x58] sm:$0xff]
        %v541 = vld [vmem:[%s3 + $0x60] sm:$0xff]
        %v542 = vld [vmem:[%s3 + $0x68] sm:$0xff]
        %v543 = vld [vmem:[%s3 + $0x70] sm:$0xff]
        %v544 = vld [vmem:[%s3 + $0x78] sm:$0xff]
        %v545 = vld [vmem:[%s4] sm:$0x1]
        %v547 = vperm.slane %v545, 0
        %549 = vmatpush.msra.mxu0 %v544
        %550 = vmatpush.msra.mxu0 %v543
        %551 = vmatpush.msra.mxu0 %v542
        %552 = vmatpush.msra.mxu0 %v541
        %553 = vmatpush.msra.mxu0 %v540
        %554 = vmatpush.msra.mxu0 %v539
        %555 = vmatpush.msra.mxu0 %v538
        %556 = vmatpush.msra.mxu0 %v537
        %557 = vmatpush.msra.mxu0 %v536
        %558 = vmatpush.msra.mxu0 %v535
        %559 = vmatpush.msra.mxu0 %v534
        %560 = vmatpush.msra.mxu0 %v533
        %561 = vmatpush.msra.mxu0 %v532
        %562 = vmatpush.msra.mxu0 %v531
        %563 = vmatpush.msra.mxu0 %v530
        %564 = vmatpush.msra.mxu0 %v529
        %565 = vmatmul.f32.gmra.mxu0 %v521
        %v566 = vpop.f32.mrf.mxu0
        %v567 = vadd.f32 %v547, %v566
        %568 = vmatmul.f32.gmra.mxu0 %v522
        %v569 = vpop.f32.mrf.mxu0
        %v570 = vadd.f32 %v547, %v569
        %571 = vmatmul.f32.gmra.mxu0 %v523
        %v572 = vpop.f32.mrf.mxu0
        %v573 = vadd.f32 %v547, %v572
        %574 = vmatmul.f32.gmra.mxu0 %v524
        %v575 = vpop.f32.mrf.mxu0
        %v576 = vadd.f32 %v547, %v575
        %577 = vmatmul.f32.gmra.mxu0 %v525
        %v578 = vpop.f32.mrf.mxu0
        %v579 = vadd.f32 %v547, %v578
        %580 = vmatmul.f32.gmra.mxu0 %v526
        %v581 = vpop.f32.mrf.mxu0
        %v582 = vadd.f32 %v547, %v581
        %583 = vmatmul.f32.gmra.mxu0 %v527
        %v584 = vpop.f32.mrf.mxu0
        %v585 = vadd.f32 %v547, %v584
        %586 = vmatmul.f32.gmra.mxu0 %v528
        %v587 = vpop.f32.mrf.mxu0
        %v588 = vadd.f32 %v547, %v587
        %589 = vdwg.mxu0
        %v590 = vtanh.pop %v567
        %v591 = vtanh.pop %v570
        %v592 = vtanh.pop %v573
        %v593 = vtanh.pop %v576
        %v594 = vtanh.pop %v579
        %v595 = vtanh.pop %v582
        %v596 = vtanh.pop %v585
        %v597 = vtanh.pop %v588
        %v598 = vld [vmem:[#allocation2] sm:$0xff]
        %v599 = vld [vmem:[#allocation2 + $0x8] sm:$0xff]
        %v600 = vld [vmem:[#allocation2 + $0x10] sm:$0xff]
        %v601 = vld [vmem:[#allocation2 + $0x18] sm:$0xff]
        %v602 = vld [vmem:[#allocation2 + $0x20] sm:$0xff]
        %v603 = vld [vmem:[#allocation2 + $0x28] sm:$0xff]
        %v604 = vld [vmem:[#allocation2 + $0x30] sm:$0xff]
        %v605 = vld [vmem:[#allocation2 + $0x38] sm:$0xff]
        %v606 = vld [vmem:[#allocation2 + $0x40] sm:$0xff]
        %v607 = vld [vmem:[#allocation2 + $0x48] sm:$0xff]
        %v608 = vld [vmem:[#allocation2 + $0x50] sm:$0xff]
        %v609 = vld [vmem:[#allocation2 + $0x58] sm:$0xff]
        %v610 = vld [vmem:[#allocation2 + $0x60] sm:$0xff]
        %v611 = vld [vmem:[#allocation2 + $0x68] sm:$0xff]
        %v612 = vld [vmem:[#allocation2 + $0x70] sm:$0xff]
        %v613 = vld [vmem:[#allocation2 + $0x78] sm:$0xff]
        %v614 = vld [vmem:[%s6] sm:$0x1]
        %v616 = vperm.slane %v614, 0
        %618 = vmatpush.msra.mxu0 %v613
        %619 = vmatpush.msra.mxu0 %v612
        %620 = vmatpush.msra.mxu0 %v611
        %621 = vmatpush.msra.mxu0 %v610
        %622 = vmatpush.msra.mxu0 %v609
        %623 = vmatpush.msra.mxu0 %v608
        %624 = vmatpush.msra.mxu0 %v607
        %625 = vmatpush.msra.mxu0 %v606
        %626 = vmatpush.msra.mxu0 %v605
        %627 = vmatpush.msra.mxu0 %v604
        %628 = vmatpush.msra.mxu0 %v603
        %629 = vmatpush.msra.mxu0 %v602
        %630 = vmatpush.msra.mxu0 %v601
        %631 = vmatpush.msra.mxu0 %v600
        %632 = vmatpush.msra.mxu0 %v599
        %633 = vmatpush.msra.mxu0 %v598
        %634 = vmatmul.f32.gmra.mxu0 %v590
        %v635 = vpop.f32.mrf.mxu0
        %v636 = vadd.f32 %v616, %v635
        %637 = vmatmul.f32.gmra.mxu0 %v591
        %v638 = vpop.f32.mrf.mxu0
        %v639 = vadd.f32 %v616, %v638
        %640 = vmatmul.f32.gmra.mxu0 %v592
        %v641 = vpop.f32.mrf.mxu0
        %v642 = vadd.f32 %v616, %v641
        %643 = vmatmul.f32.gmra.mxu0 %v593
        %v644 = vpop.f32.mrf.mxu0
        %v645 = vadd.f32 %v616, %v644
        %646 = vmatmul.f32.gmra.mxu0 %v594
        %v647 = vpop.f32.mrf.mxu0
        %v648 = vadd.f32 %v616, %v647
        %649 = vmatmul.f32.gmra.mxu0 %v595
        %v650 = vpop.f32.mrf.mxu0
        %v651 = vadd.f32 %v616, %v650
        %652 = vmatmul.f32.gmra.mxu0 %v596
        %v653 = vpop.f32.mrf.mxu0
        %v654 = vadd.f32 %v616, %v653
        %655 = vmatmul.f32.gmra.mxu0 %v597
        %v656 = vpop.f32.mrf.mxu0
        %v657 = vadd.f32 %v616, %v656
        %658 = vdwg.mxu0
        %v659 = vtanh.pop %v636
        %v660 = vtanh.pop %v639
        %v661 = vtanh.pop %v642
        %v662 = vtanh.pop %v645
        %v663 = vtanh.pop %v648
        %v664 = vtanh.pop %v651
        %v665 = vtanh.pop %v654
        %v666 = vtanh.pop %v657
        %v667 = vld [vmem:[#allocation5] sm:$0xff]
        %v668 = vld [vmem:[#allocation5 + $0x8] sm:$0xff]
        %v669 = vld [vmem:[#allocation5 + $0x10] sm:$0xff]
        %v670 = vld [vmem:[#allocation5 + $0x18] sm:$0xff]
        %v671 = vld [vmem:[#allocation5 + $0x20] sm:$0xff]
        %v672 = vld [vmem:[#allocation5 + $0x28] sm:$0xff]
        %v673 = vld [vmem:[#allocation5 + $0x30] sm:$0xff]
        %v674 = vld [vmem:[#allocation5 + $0x38] sm:$0xff]
        %v675 = vld [vmem:[#allocation5 + $0x40] sm:$0xff]
        %v676 = vld [vmem:[#allocation5 + $0x48] sm:$0xff]
        %v677 = vld [vmem:[#allocation5 + $0x50] sm:$0xff]
        %v678 = vld [vmem:[#allocation5 + $0x58] sm:$0xff]
        %v679 = vld [vmem:[#allocation5 + $0x60] sm:$0xff]
        %v680 = vld [vmem:[#allocation5 + $0x68] sm:$0xff]
        %v681 = vld [vmem:[#allocation5 + $0x70] sm:$0xff]
        %v682 = vld [vmem:[#allocation5 + $0x78] sm:$0xff]
        %v683 = vld [vmem:[%s8] sm:$0x1]
        %v685 = vperm.slane %v683, 0
        %687 = vmatpush.msra.mxu0 %v682
        %688 = vmatpush.msra.mxu0 %v681
        %689 = vmatpush.msra.mxu0 %v680
        %690 = vmatpush.msra.mxu0 %v679
        %691 = vmatpush.msra.mxu0 %v678
        %692 = vmatpush.msra.mxu0 %v677
        %693 = vmatpush.msra.mxu0 %v676
        %694 = vmatpush.msra.mxu0 %v675
        %695 = vmatpush.msra.mxu0 %v674
        %696 = vmatpush.msra.mxu0 %v673
        %697 = vmatpush.msra.mxu0 %v672
        %698 = vmatpush.msra.mxu0 %v671
        %699 = vmatpush.msra.mxu0 %v670
        %700 = vmatpush.msra.mxu0 %v669
        %701 = vmatpush.msra.mxu0 %v668
        %702 = vmatpush.msra.mxu0 %v667
        %703 = vmatmul.f32.gmra.mxu0 %v659
        %v704 = vpop.f32.mrf.mxu0
        %v705 = vadd.f32 %v685, %v704
        %706 = vmatmul.f32.gmra.mxu0 %v660
        %v707 = vpop.f32.mrf.mxu0
        %v708 = vadd.f32 %v685, %v707
        %709 = vmatmul.f32.gmra.mxu0 %v661
        %v710 = vpop.f32.mrf.mxu0
        %v711 = vadd.f32 %v685, %v710
        %712 = vmatmul.f32.gmra.mxu0 %v662
        %v713 = vpop.f32.mrf.mxu0
        %v714 = vadd.f32 %v685, %v713
        %715 = vmatmul.f32.gmra.mxu0 %v663
        %v716 = vpop.f32.mrf.mxu0
        %v717 = vadd.f32 %v685, %v716
        %718 = vmatmul.f32.gmra.mxu0 %v664
        %v719 = vpop.f32.mrf.mxu0
        %v720 = vadd.f32 %v685, %v719
        %721 = vmatmul.f32.gmra.mxu0 %v665
        %v722 = vpop.f32.mrf.mxu0
        %v723 = vadd.f32 %v685, %v722
        %724 = vmatmul.f32.gmra.mxu0 %v666
        %v725 = vpop.f32.mrf.mxu0
        %v726 = vadd.f32 %v685, %v725
        %727 = vdwg.mxu0
        %v728 = vtanh.pop %v705
        %v729 = vtanh.pop %v708
        %v730 = vtanh.pop %v711
        %v731 = vtanh.pop %v714
        %v732 = vtanh.pop %v717
        %v733 = vtanh.pop %v720
        %v734 = vtanh.pop %v723
        %v735 = vtanh.pop %v726
        %v736 = vld [vmem:[#allocation7] sm:$0xff]
        %v737 = vld [vmem:[#allocation7 + $0x8] sm:$0xff]
        %v738 = vld [vmem:[#allocation7 + $0x10] sm:$0xff]
        %v739 = vld [vmem:[#allocation7 + $0x18] sm:$0xff]
        %v740 = vld [vmem:[#allocation7 + $0x20] sm:$0xff]
        %v741 = vld [vmem:[#allocation7 + $0x28] sm:$0xff]
        %v742 = vld [vmem:[#allocation7 + $0x30] sm:$0xff]
        %v743 = vld [vmem:[#allocation7 + $0x38] sm:$0xff]
        %v744 = vld [vmem:[#allocation7 + $0x40] sm:$0xff]
        %v745 = vld [vmem:[#allocation7 + $0x48] sm:$0xff]
        %v746 = vld [vmem:[#allocation7 + $0x50] sm:$0xff]
        %v747 = vld [vmem:[#allocation7 + $0x58] sm:$0xff]
        %v748 = vld [vmem:[#allocation7 + $0x60] sm:$0xff]
        %v749 = vld [vmem:[#allocation7 + $0x68] sm:$0xff]
        %v750 = vld [vmem:[#allocation7 + $0x70] sm:$0xff]
        %v751 = vld [vmem:[#allocation7 + $0x78] sm:$0xff]
        %v752 = vld [vmem:[%s10] sm:$0x1]
        %v754 = vperm.slane %v752, 0
        %756 = vmatpush.msra.mxu0 %v751
        %757 = vmatpush.msra.mxu0 %v750
        %758 = vmatpush.msra.mxu0 %v749
        %759 = vmatpush.msra.mxu0 %v748
        %760 = vmatpush.msra.mxu0 %v747
        %761 = vmatpush.msra.mxu0 %v746
        %762 = vmatpush.msra.mxu0 %v745
        %763 = vmatpush.msra.mxu0 %v744
        %764 = vmatpush.msra.mxu0 %v743
        %765 = vmatpush.msra.mxu0 %v742
        %766 = vmatpush.msra.mxu0 %v741
        %767 = vmatpush.msra.mxu0 %v740
        %768 = vmatpush.msra.mxu0 %v739
        %769 = vmatpush.msra.mxu0 %v738
        %770 = vmatpush.msra.mxu0 %v737
        %771 = vmatpush.msra.mxu0 %v736
        %772 = vmatmul.f32.gmra.mxu0 %v728
        %v773 = vpop.f32.mrf.mxu0
        %v774 = vadd.f32 %v754, %v773
        %775 = vmatmul.f32.gmra.mxu0 %v729
        %v776 = vpop.f32.mrf.mxu0
        %v777 = vadd.f32 %v754, %v776
        %778 = vmatmul.f32.gmra.mxu0 %v730
        %v779 = vpop.f32.mrf.mxu0
        %v780 = vadd.f32 %v754, %v779
        %781 = vmatmul.f32.gmra.mxu0 %v731
        %v782 = vpop.f32.mrf.mxu0
        %v783 = vadd.f32 %v754, %v782
        %784 = vmatmul.f32.gmra.mxu0 %v732
        %v785 = vpop.f32.mrf.mxu0
        %v786 = vadd.f32 %v754, %v785
        %787 = vmatmul.f32.gmra.mxu0 %v733
        %v788 = vpop.f32.mrf.mxu0
        %v789 = vadd.f32 %v754, %v788
        %790 = vmatmul.f32.gmra.mxu0 %v734
        %v791 = vpop.f32.mrf.mxu0
        %v792 = vadd.f32 %v754, %v791
        %793 = vmatmul.f32.gmra.mxu0 %v735
        %v794 = vpop.f32.mrf.mxu0
        %v795 = vadd.f32 %v754, %v794
        %796 = vdwg.mxu0
        %v797 = vtanh.pop %v774
        %v798 = vtanh.pop %v777
        %v799 = vtanh.pop %v780
        %v800 = vtanh.pop %v783
        %v801 = vtanh.pop %v786
        %v802 = vtanh.pop %v789
        %v803 = vtanh.pop %v792
        %v804 = vtanh.pop %v795
        %805 = vst [vmem:[%s430] sm:$0xff] %v797
        %806 = vst [vmem:[%s430 + $0x8] sm:$0xff] %v798
        %807 = vst [vmem:[%s430 + $0x10] sm:$0xff] %v799
        %808 = vst [vmem:[%s430 + $0x18] sm:$0xff] %v800
        %809 = vst [vmem:[%s430 + $0x20] sm:$0xff] %v801
        %810 = vst [vmem:[%s430 + $0x28] sm:$0xff] %v802
        %811 = vst [vmem:[%s430 + $0x30] sm:$0xff] %v803
        %812 = vst [vmem:[%s430 + $0x38] sm:$0xff] %v804
        %s813 = sand.u32 %s271, 1
        %s814 = scalar_lea.sflag [#allocation4], %s813
        %s815 = sand.u32 %s271, 1
        %s816 = smul.addr %s815, 64
        %s817 = scalar_lea.vmem [#allocation8], %s816
        // Predicated region
        $region77: #{tpu_custom_call.1} parent=63 // pred_check
          %p818 = pneg %p281
        $region78: #{tpu_custom_call.1} parent=63 // pred_check_branch
          %820 = sbr.rel (%p818) target = $region80
        $region79: #{tpu_custom_call.1} parent=63 // pred_region
          %s821 = smul.u32 8, %s27
          %823 = vsyncadd %s814, 0
          %s824 = smul.addr %s821, 8
          %s825 = scalar_lea.hbm %s11, %s824
          %s826 = sshll.u32 %s817, 4
          %s827 = int_to_ptr.vmem [resolvable:$true] %s826
          %s828 = sshll.u32 %s825, 4
          %s829 = int_to_ptr.hbm [resolvable:$true] %s828
          %834 = dma.vmem_to_hbm [thread:$0]  %s827, 1024, %s829, %s814, 128, 128, 8
        $region80: #{tpu_custom_call.1} parent=63 // pred_fallthru
          _
      $region64: #{tpu_custom_call.1} parent=5 // pred_fallthru
        _
      %p835 = scmp.le.s32.totalorder 2, %s22
      // Predicated region
      $region81: #{tpu_custom_call.1} parent=5 // pred_check
        %p836 = pneg %p835
      $region82: #{tpu_custom_call.1} parent=5 // pred_check_branch
        %838 = sbr.rel (%p836) target = $region84
      $region83: #{tpu_custom_call.1} parent=5 // pred_region
        %s839 = ssub.s32 %s22, 2
        // Predicated region
        $region85: #{tpu_custom_call.1} parent=83 // pred_check
          %p840 = pneg %p287
        $region86: #{tpu_custom_call.1} parent=83 // pred_check_branch
          %842 = sbr.rel (%p840) target = $region88
        $region87: #{tpu_custom_call.1} parent=83 // pred_region
          %s843 = sand.u32 %s272, 1
          %s844 = scalar_lea.sflag [#allocation4], %s843
          %s845 = sand.u32 %s272, 1
          %s846 = smul.addr %s845, 64
          %s847 = scalar_lea.vmem [#allocation8], %s846
          %849 = dma.done %s844, 1024
        $region88: #{tpu_custom_call.1} parent=83 // pred_fallthru
          _
      $region84: #{tpu_custom_call.1} parent=5 // pred_fallthru
        _
    $region6: #{tpu_custom_call.1} parent=1 // loop_footer
      %s26 = sadd.s32 1, %s22
    $region7: #{tpu_custom_call.1} parent=1 // loop_footer_branch
      %21 = sbr.rel target = $region3
    $region8: #{tpu_custom_call.1} parent=1 // loop_exit
      _
    %850 = vsyncpa [#allocation3], 1
    %s851 = scalar_lea.sflag [#allocation3], 1
    %852 = vsyncpa %s851, 1
    %853 = vsyncpa [#allocation6], 1
    %854 = vsyncpa [#allocation4], 1
    %s855 = scalar_lea.sflag [#allocation4], 1
    %856 = vsyncpa %s855, 1

</llo_original>
